<compile_context>
chip_gen: v5e
topology: v5e:2x2
jax: 0.10.0
libtpu: 0.0.40
codegen_flags: <defaults>
</compile_context>

<pallas_src>
import math

import jax
import jax.numpy as jnp
from jax.experimental import pallas as pl
from jax.experimental.pallas import tpu as pltpu  # noqa: F401  (kept for TPU-specific params if needed)

# ---------------- configuration (small, consistent with the module) -----------
VOCAB = 50
D_MODEL = 32          # embed_dim == d_model (required by the PyTorch forward)
N_HEAD = 4
HEAD_DIM = D_MODEL // N_HEAD       # 8
SEQ_LEN = 8
NUM_CLASS = 5
FF_DIM = D_MODEL                   # TransformerLayer(..., feedforward_dim=d_model, ...)
PAD_IDX = 0
LN_EPS = 1e-5
SCALE = math.sqrt(HEAD_DIM)
BATCH = 2
BL = BATCH * SEQ_LEN
BN = BATCH * N_HEAD


# ---------------- glue: relative positional sin/cos table ---------------------
def relative_pos_embedding(seq_len, dim):
    """Row l (l = 0..2L-1) is the sin/cos embedding of relative position (l - L),
    exactly matching RelativePositionalEmbedding for seq_len <= init_size//2."""
    half = dim // 2
    scale = math.log(10000.0) / (half - 1)
    inv = jnp.exp(jnp.arange(half, dtype=jnp.float32) * -scale)
    rel = jnp.arange(-seq_len, seq_len, dtype=jnp.float32)
    ang = rel[:, None] * inv[None, :]
    return jnp.concatenate([jnp.sin(ang), jnp.cos(ang)], axis=1)  # (2L, dim)


def _erf(x):
    # Abramowitz & Stegun 7.1.26 rational approximation (|err| < 1.5e-7),
    # built only from ops that lower cleanly in Mosaic (exp/mul/add/where).
    a1, a2, a3, a4, a5 = 0.254829592, -0.284496736, 1.421413741, -1.453152027, 1.061405429
    p = 0.3275911
    ax = jnp.abs(x)
    t = 1.0 / (1.0 + p * ax)
    poly = ((((a5 * t + a4) * t + a3) * t + a2) * t + a1) * t
    y = 1.0 - poly * jnp.exp(-ax * ax)
    return jnp.where(x >= 0, y, -y)


# ---------------- the fused Pallas kernel (whole batch, one invocation) -------
def fused_encoder_kernel(x_ref,      # (B*L, D)   embedded tokens, batch-major
                         mkey_ref,   # (B, L)     int32 mask (key / lane orientation)
                         mcol_ref,   # (B*L, 1)   int32 mask (pooling / sublane orientation)
                         wqkv_ref,   # (D, 3D)    q-columns pre-scaled by 1/sqrt(HD)
                         rel_ref,    # (2L, HD)   rel_pos_embed @ w_kr
                         mats_ref,   # (4D, D)    [w1; w2; wp1; wp2 padded to D cols]
                         vecs_ref,   # (10, D)    [b1; b2; ln1g; ln1b; ln2g; ln2b; bp1; bp2_pad;
                                     #             rrb_flat/scale; rwb_flat/scale]
                         out_ref):   # (B, D)     logits padded to D lanes
    L, D, HD, N, B = SEQ_LEN, D_MODEL, HEAD_DIM, N_HEAD, BATCH

    x = x_ref[...]                                                         # (B*L, D)
    qkv = jnp.dot(x, wqkv_ref[...], preferred_element_type=jnp.float32)    # (B*L, 3D)

    rel = rel_ref[...]                                                     # (2L, HD)
    b1 = vecs_ref[0:1, :]
    b2 = vecs_ref[1:2, :]
    ln1g = vecs_ref[2:3, :]
    ln1b = vecs_ref[3:4, :]
    ln2g = vecs_ref[4:5, :]
    ln2b = vecs_ref[5:6, :]
    bp1 = vecs_ref[6:7, :]
    bp2 = vecs_ref[7:8, :]
    rrb_flat = vecs_ref[8:9, :]     # r_r_bias flattened head-major, pre-scaled -> (1, D)
    rwb_flat = vecs_ref[9:10, :]    # r_w_bias flattened head-major, pre-scaled -> (1, D)

    q_all = qkv[:, 0:D]
    k_all = qkv[:, D:2 * D]
    v_all = qkv[:, 2 * D:3 * D]

    def split_heads(mat):
        """(B*L, D) -> (B*N*L, HD), rows ordered (b, n, q)."""
        parts = []
        for b in range(B):
            rows = mat[b * L:(b + 1) * L, :]
            for n in range(N):
                parts.append(rows[:, n * HD:(n + 1) * HD])
        return jnp.concatenate(parts, axis=0)

    qrr = split_heads(q_all + rrb_flat).reshape(B * N, L, HD)   # q + r_r_bias (for AC)
    kh = split_heads(k_all).reshape(B * N, L, HD)
    vh = split_heads(v_all).reshape(B * N, L, HD)
    qrw = split_heads(q_all + rwb_flat)                         # q + r_w_bias (for B_+D_), 2D

    # --- AC[h,q,k] = (q + r_r_bias) . k  (one batched MXU contraction over heads) ---
    ac = jnp.einsum('hqd,hkd->hqk', qrr, kh,
                    preferred_element_type=jnp.float32)         # (B*N, L, L)

    # --- BD before the Transformer-XL shift: (q + r_w_bias) @ rel^T  (MXU) ---
    bd_full = jax.lax.dot_general(qrw, rel, (((1,), (1,)), ((), ())),
                                  preferred_element_type=jnp.float32)   # (B*N*L, 2L)
    bd_full = bd_full.reshape(B * N, L, 2 * L)
    # XL shift: BD[h, q, k] = bd_full[h, q, L + k - q]  (static per-row windows)
    bd = jnp.concatenate(
        [bd_full[:, q:q + 1, L - q:2 * L - q] for q in range(L)], axis=1)  # (B*N, L, L)

    # scale (1/sqrt(HD)) already folded into q-weights and biases at pack time
    s = ac + bd

    # --- key padding mask: masked_fill(mask==0, 1e-9) like the PyTorch code ---
    mkey = mkey_ref[...]                                                   # (B, L)
    mkey_bn = jnp.concatenate(
        [mkey[b:b + 1, :] for b in range(B) for _ in range(N)], axis=0)    # (B*N, L)
    s = jnp.where(mkey_bn[:, None, :] == 0, jnp.float32(1e-9), s)

    # --- softmax over keys (exp on EUP, approx reciprocal on EUP) ---
    s = s - jnp.max(s, axis=-1, keepdims=True)
    p = jnp.exp(s)
    p = p * pl.reciprocal(jnp.sum(p, axis=-1, keepdims=True), approx=True)

    # --- attn @ V (batched over heads) ---
    o = jnp.einsum('hqk,hkd->hqd', p, vh,
                   preferred_element_type=jnp.float32)                     # (B*N, L, HD)

    # --- merge heads back to (B*L, D), head-major within D ---
    attn_out = jnp.concatenate(
        [jnp.concatenate([o[b * N + n] for n in range(N)], axis=-1) for b in range(B)],
        axis=0)                                                            # (B*L, D)

    def layernorm(h, g, beta):
        mu = jnp.mean(h, axis=-1, keepdims=True)
        c = h - mu
        var = jnp.mean(c * c, axis=-1, keepdims=True)
        return c * jax.lax.rsqrt(var + LN_EPS) * g + beta

    # --- residual + LayerNorm 1 ---
    h = layernorm(x + attn_out, ln1g, ln1b)

    # --- FFN + residual + LayerNorm 2 ---
    w1 = mats_ref[0:D, :]
    w2 = mats_ref[D:2 * D, :]
    wp1 = mats_ref[2 * D:3 * D, :]
    wp2 = mats_ref[3 * D:4 * D, :]

    ff = jnp.maximum(jnp.dot(h, w1, preferred_element_type=jnp.float32) + b1, 0.0)
    ff = jnp.dot(ff, w2, preferred_element_type=jnp.float32) + b2
    y = layernorm(h + ff, ln2g, ln2b)

    # --- masked max-pool over the sequence (fill with -inf like the PyTorch code) ---
    mcol = mcol_ref[...]                                                   # (B*L, 1)
    y = jnp.where(mcol == 0, -jnp.inf, y)
    pooled = jnp.concatenate(
        [jnp.max(y[b * L:(b + 1) * L, :], axis=0, keepdims=True) for b in range(B)],
        axis=0)                                                            # (B, D)

    # --- prediction head: Linear -> exact GELU (erf) -> Linear (padded to D lanes) ---
    z = jnp.dot(pooled, wp1, preferred_element_type=jnp.float32) + bp1
    z = 0.5 * z * (1.0 + _erf(z * jnp.float32(1.0 / math.sqrt(2.0))))
    logits = jnp.dot(z, wp2, preferred_element_type=jnp.float32) + bp2     # (B, D)
    out_ref[...] = logits                                                  # full-width store


# ---------------- wrapper: pack parameters + call the kernel ------------------
def build_packed(P):
    """Precompute parameter slabs once (everything here is parameter-only).
    The 1/sqrt(head_dim) attention scale is folded into the q-projection
    columns of wqkv and into r_r_bias / r_w_bias, so the kernel never scales."""
    pe = relative_pos_embedding(SEQ_LEN, HEAD_DIM)                 # (2L, HD)
    rel = pe @ P["wkr"]                                            # (2L, HD)
    inv_scale = jnp.float32(1.0 / SCALE)
    wqkv_scaled = P["wqkv"].at[:, 0:D_MODEL].multiply(inv_scale)   # scale q-columns only
    rrb_scaled = (P["rrb"] * inv_scale).reshape(-1)                # (D,)
    rwb_scaled = (P["rwb"] * inv_scale).reshape(-1)                # (D,)
    wp2_pad = jnp.zeros((D_MODEL, D_MODEL), jnp.float32).at[:, :NUM_CLASS].set(P["wp2"])
    bp2_pad = jnp.zeros((D_MODEL,), jnp.float32).at[:NUM_CLASS].set(P["bp2"])
    mats = jnp.concatenate([P["w1"], P["w2"], P["wp1"], wp2_pad], axis=0)   # (4D, D)
    vecs = jnp.stack([P["b1"], P["b2"], P["ln1g"], P["ln1b"],
                      P["ln2g"], P["ln2b"], P["bp1"], bp2_pad,
                      rrb_scaled, rwb_scaled], axis=0)                      # (10, D)
    return dict(emb=P["emb"], wqkv=wqkv_scaled, rel=rel, mats=mats, vecs=vecs)


@jax.jit
def encoder_forward(x_ids, mask, packed):
    # TODO(synk): embedding gather (dynamic row lookup) stays in XLA; in-kernel it
    # would need a manual DMA gather which is not worthwhile at this size.
    x_emb = packed["emb"][x_ids].astype(jnp.float32).reshape(BL, D_MODEL)  # gather in JAX
    mkey = mask.astype(jnp.int32)                                          # (B, L)
    mcol = mkey.reshape(BL, 1)                                             # (B*L, 1)
    logits_pad = pl.pallas_call(
        fused_encoder_kernel,
        out_shape=jax.ShapeDtypeStruct((BATCH, D_MODEL), jnp.float32),
    )(x_emb, mkey, mcol, packed["wqkv"], packed["rel"], packed["mats"], packed["vecs"])
    return logits_pad[:, :NUM_CLASS]


# ---------------- pure-JAX reference (literal port of the PyTorch forward) ----
def _layernorm(x, g, b):
    mu = x.mean(-1, keepdims=True)
    var = ((x - mu) ** 2).mean(-1, keepdims=True)
    return (x - mu) / jnp.sqrt(var + LN_EPS) * g + b


def pred_head(pooled, P):
    h = pooled @ P["wp1"] + P["bp1"]
    h = jax.nn.gelu(h, approximate=False)   # nn.GELU() default = exact (erf)
    return h @ P["wp2"] + P["bp2"]


def reference_forward(x_ids, mask, P):
    L = SEQ_LEN
    x = P["emb"][x_ids].astype(jnp.float32)
    pe = relative_pos_embedding(L, HEAD_DIM)
    qkv = x @ P["wqkv"]
    q, k, v = jnp.split(qkv, 3, axis=-1)

    def heads(t):
        return t.reshape(t.shape[0], L, N_HEAD, HEAD_DIM).transpose(0, 2, 1, 3)

    q, k, v = heads(q), heads(k), heads(v)
    rw_head_q = q + P["rrb"][None, :, None, :]
    AC = jnp.einsum("bnqd,bnkd->bnqk", rw_head_q, k)
    rel = pe @ P["wkr"]
    D_ = jnp.einsum("nd,ld->nl", P["rwb"], rel)[None, :, None, :]
    B_ = jnp.einsum("bnqd,ld->bnql", q, rel)
    BD = B_ + D_
    # literal _shift
    b, n, _, _ = BD.shape
    zp = jnp.zeros((b, n, L, 1), BD.dtype)
    BD = jnp.concatenate([BD, zp], axis=-1).reshape(b, n, 2 * L + 1, L)
    BD = BD[:, :, :-1].reshape(b, n, L, 2 * L)[:, :, :, L:]
    attn = (AC + BD) / SCALE
    attn = jnp.where(mask[:, None, None, :] == 0, 1e-9, attn)
    attn = jax.nn.softmax(attn, axis=-1)
    out = jnp.einsum("bnqk,bnkd->bnqd", attn, v).transpose(0, 2, 1, 3).reshape(x.shape)
    h = _layernorm(x + out, P["ln1g"], P["ln1b"])
    ff = jnp.maximum(h @ P["w1"] + P["b1"], 0.0) @ P["w2"] + P["b2"]
    h = _layernorm(h + ff, P["ln2g"], P["ln2b"])
    pooled = jnp.max(jnp.where(mask[:, :, None] == 0, -jnp.inf, h), axis=1)
    return pred_head(pooled, P)


# ---------------- deterministic parameter init + run ---------------------------
def make_params(key):
    ks = jax.random.split(key, 14)
    n = jax.random.normal
    emb = 0.1 * n(ks[0], (VOCAB, D_MODEL), jnp.float32)
    emb = emb.at[PAD_IDX].set(0.0)
    P = dict(
        emb=emb,
        wqkv=n(ks[1], (D_MODEL, 3 * D_MODEL), jnp.float32) / math.sqrt(D_MODEL),
        rrb=0.1 * n(ks[2], (N_HEAD, HEAD_DIM), jnp.float32),
        rwb=0.1 * n(ks[3], (N_HEAD, HEAD_DIM), jnp.float32),
        wkr=n(ks[4], (HEAD_DIM, HEAD_DIM), jnp.float32) / math.sqrt(HEAD_DIM),
        w1=n(ks[5], (D_MODEL, FF_DIM), jnp.float32) / math.sqrt(D_MODEL),
        b1=0.01 * n(ks[6], (FF_DIM,), jnp.float32),
        w2=n(ks[7], (FF_DIM, D_MODEL), jnp.float32) / math.sqrt(FF_DIM),
        b2=0.01 * n(ks[8], (D_MODEL,), jnp.float32),
        ln1g=jnp.ones((D_MODEL,), jnp.float32),
        ln1b=jnp.zeros((D_MODEL,), jnp.float32),
        ln2g=jnp.ones((D_MODEL,), jnp.float32),
        ln2b=jnp.zeros((D_MODEL,), jnp.float32),
        wp1=n(ks[9], (D_MODEL, D_MODEL), jnp.float32) / math.sqrt(D_MODEL),
        bp1=0.01 * n(ks[10], (D_MODEL,), jnp.float32),
        wp2=n(ks[11], (D_MODEL, NUM_CLASS), jnp.float32) / math.sqrt(D_MODEL),
        bp2=0.01 * n(ks[12], (NUM_CLASS,), jnp.float32),
    )
    return P, ks[13]


if __name__ == "__main__":
    P, data_key = make_params(jax.random.PRNGKey(0))
    packed = build_packed(P)

    x_ids = jax.random.randint(data_key, (BATCH, SEQ_LEN), 0, VOCAB, dtype=jnp.int32)
    mask = jnp.array([[1, 1, 1, 1, 1, 1, 1, 1],
                      [1, 1, 1, 1, 1, 0, 0, 0]], dtype=jnp.int32)

    logits = encoder_forward(x_ids, mask, packed)
    logits = jax.block_until_ready(logits)

    ref = reference_forward(x_ids, mask, P)
    assert logits.shape == (BATCH, NUM_CLASS)
    assert bool(jnp.all(jnp.isfinite(logits)))
    assert jnp.allclose(logits, ref, atol=3e-2, rtol=3e-2), "kernel/ref mismatch"

    print("KERNEL_OK")
</pallas_src>

<mosaic_0001>
module attributes {stable_mosaic.version = 11 : i64} {
  func.func @fused_encoder_kernel(%arg0: memref<16x32xf32, #tpu.memory_space<vmem>>, %arg1: memref<2x8xi32, #tpu.memory_space<vmem>>, %arg2: memref<16x1xi32, #tpu.memory_space<vmem>>, %arg3: memref<32x96xf32, #tpu.memory_space<vmem>>, %arg4: memref<16x8xf32, #tpu.memory_space<vmem>>, %arg5: memref<128x32xf32, #tpu.memory_space<vmem>>, %arg6: memref<10x32xf32, #tpu.memory_space<vmem>>, %arg7: memref<2x32xf32, #tpu.memory_space<vmem>>) attributes {dimension_semantics = [], scalar_prefetch = 0 : i64, scratch_operands = 0 : i64, tpu.core_type = #tpu.core_type<tc>} {
    %c0 = arith.constant 0 : index
    %c0_0 = arith.constant 0 : index
    %0 = vector.load %arg0[%c0, %c0_0] : memref<16x32xf32, #tpu.memory_space<vmem>>, vector<16x32xf32>
    %c0_1 = arith.constant 0 : index
    %c0_2 = arith.constant 0 : index
    %1 = vector.load %arg3[%c0_1, %c0_2] : memref<32x96xf32, #tpu.memory_space<vmem>>, vector<32x96xf32>
    %cst = arith.constant dense<0.000000e+00> : vector<16x96xf32>
    %2 = tpu.matmul %0, %1, %cst {dimension_numbers = #tpu.dot_dimension_numbers<[1], [0], [0], [1], [0, 0, 1, 1], [], []>} : vector<16x32xf32>, vector<32x96xf32>, vector<16x96xf32> -> vector<16x96xf32>
    %c0_3 = arith.constant 0 : index
    %c0_4 = arith.constant 0 : index
    %3 = vector.load %arg4[%c0_3, %c0_4] : memref<16x8xf32, #tpu.memory_space<vmem>>, vector<16x8xf32>
    %c0_5 = arith.constant 0 : index
    %c0_6 = arith.constant 0 : index
    %4 = vector.load %arg6[%c0_5, %c0_6] : memref<10x32xf32, #tpu.memory_space<vmem>>, vector<1x32xf32>
    %c1 = arith.constant 1 : index
    %c0_7 = arith.constant 0 : index
    %5 = vector.load %arg6[%c1, %c0_7] : memref<10x32xf32, #tpu.memory_space<vmem>>, vector<1x32xf32>
    %c2 = arith.constant 2 : index
    %c0_8 = arith.constant 0 : index
    %6 = vector.load %arg6[%c2, %c0_8] : memref<10x32xf32, #tpu.memory_space<vmem>>, vector<1x32xf32>
    %c3 = arith.constant 3 : index
    %c0_9 = arith.constant 0 : index
    %7 = vector.load %arg6[%c3, %c0_9] : memref<10x32xf32, #tpu.memory_space<vmem>>, vector<1x32xf32>
    %c4 = arith.constant 4 : index
    %c0_10 = arith.constant 0 : index
    %8 = vector.load %arg6[%c4, %c0_10] : memref<10x32xf32, #tpu.memory_space<vmem>>, vector<1x32xf32>
    %c5 = arith.constant 5 : index
    %c0_11 = arith.constant 0 : index
    %9 = vector.load %arg6[%c5, %c0_11] : memref<10x32xf32, #tpu.memory_space<vmem>>, vector<1x32xf32>
    %c6 = arith.constant 6 : index
    %c0_12 = arith.constant 0 : index
    %10 = vector.load %arg6[%c6, %c0_12] : memref<10x32xf32, #tpu.memory_space<vmem>>, vector<1x32xf32>
    %c7 = arith.constant 7 : index
    %c0_13 = arith.constant 0 : index
    %11 = vector.load %arg6[%c7, %c0_13] : memref<10x32xf32, #tpu.memory_space<vmem>>, vector<1x32xf32>
    %c8 = arith.constant 8 : index
    %c0_14 = arith.constant 0 : index
    %12 = vector.load %arg6[%c8, %c0_14] : memref<10x32xf32, #tpu.memory_space<vmem>>, vector<1x32xf32>
    %c9 = arith.constant 9 : index
    %c0_15 = arith.constant 0 : index
    %13 = vector.load %arg6[%c9, %c0_15] : memref<10x32xf32, #tpu.memory_space<vmem>>, vector<1x32xf32>
    %14 = vector.extract_strided_slice %2 {offsets = [0, 0], sizes = [16, 32], strides = [1, 1]} : vector<16x96xf32> to vector<16x32xf32>
    %15 = vector.extract_strided_slice %2 {offsets = [0, 32], sizes = [16, 32], strides = [1, 1]} : vector<16x96xf32> to vector<16x32xf32>
    %16 = vector.extract_strided_slice %2 {offsets = [0, 64], sizes = [16, 32], strides = [1, 1]} : vector<16x96xf32> to vector<16x32xf32>
    %17 = vector.broadcast %12 : vector<1x32xf32> to vector<16x32xf32>
    %18 = arith.addf %14, %17 : vector<16x32xf32>
    %19 = vector.extract_strided_slice %18 {offsets = [0, 0], sizes = [8, 32], strides = [1, 1]} : vector<16x32xf32> to vector<8x32xf32>
    %20 = vector.extract_strided_slice %19 {offsets = [0, 0], sizes = [8, 8], strides = [1, 1]} : vector<8x32xf32> to vector<8x8xf32>
    %21 = vector.extract_strided_slice %19 {offsets = [0, 8], sizes = [8, 8], strides = [1, 1]} : vector<8x32xf32> to vector<8x8xf32>
    %22 = vector.extract_strided_slice %19 {offsets = [0, 16], sizes = [8, 8], strides = [1, 1]} : vector<8x32xf32> to vector<8x8xf32>
    %23 = vector.extract_strided_slice %19 {offsets = [0, 24], sizes = [8, 8], strides = [1, 1]} : vector<8x32xf32> to vector<8x8xf32>
    %24 = vector.extract_strided_slice %18 {offsets = [8, 0], sizes = [8, 32], strides = [1, 1]} : vector<16x32xf32> to vector<8x32xf32>
    %25 = vector.extract_strided_slice %24 {offsets = [0, 0], sizes = [8, 8], strides = [1, 1]} : vector<8x32xf32> to vector<8x8xf32>
    %26 = vector.extract_strided_slice %24 {offsets = [0, 8], sizes = [8, 8], strides = [1, 1]} : vector<8x32xf32> to vector<8x8xf32>
    %27 = vector.extract_strided_slice %24 {offsets = [0, 16], sizes = [8, 8], strides = [1, 1]} : vector<8x32xf32> to vector<8x8xf32>
    %28 = vector.extract_strided_slice %24 {offsets = [0, 24], sizes = [8, 8], strides = [1, 1]} : vector<8x32xf32> to vector<8x8xf32>
    %29 = tpu.concatenate %20, %21, %22, %23, %25, %26, %27, %28 in 0 : vector<8x8xf32>, vector<8x8xf32>, vector<8x8xf32>, vector<8x8xf32>, vector<8x8xf32>, vector<8x8xf32>, vector<8x8xf32>, vector<8x8xf32> -> vector<64x8xf32>
    %30 = vector.shape_cast %29 : vector<64x8xf32> to vector<8x8x8xf32>
    %31 = vector.extract_strided_slice %15 {offsets = [0, 0], sizes = [8, 32], strides = [1, 1]} : vector<16x32xf32> to vector<8x32xf32>
    %32 = vector.extract_strided_slice %31 {offsets = [0, 0], sizes = [8, 8], strides = [1, 1]} : vector<8x32xf32> to vector<8x8xf32>
    %33 = vector.extract_strided_slice %31 {offsets = [0, 8], sizes = [8, 8], strides = [1, 1]} : vector<8x32xf32> to vector<8x8xf32>
    %34 = vector.extract_strided_slice %31 {offsets = [0, 16], sizes = [8, 8], strides = [1, 1]} : vector<8x32xf32> to vector<8x8xf32>
    %35 = vector.extract_strided_slice %31 {offsets = [0, 24], sizes = [8, 8], strides = [1, 1]} : vector<8x32xf32> to vector<8x8xf32>
    %36 = vector.extract_strided_slice %15 {offsets = [8, 0], sizes = [8, 32], strides = [1, 1]} : vector<16x32xf32> to vector<8x32xf32>
    %37 = vector.extract_strided_slice %36 {offsets = [0, 0], sizes = [8, 8], strides = [1, 1]} : vector<8x32xf32> to vector<8x8xf32>
    %38 = vector.extract_strided_slice %36 {offsets = [0, 8], sizes = [8, 8], strides = [1, 1]} : vector<8x32xf32> to vector<8x8xf32>
    %39 = vector.extract_strided_slice %36 {offsets = [0, 16], sizes = [8, 8], strides = [1, 1]} : vector<8x32xf32> to vector<8x8xf32>
    %40 = vector.extract_strided_slice %36 {offsets = [0, 24], sizes = [8, 8], strides = [1, 1]} : vector<8x32xf32> to vector<8x8xf32>
    %41 = tpu.concatenate %32, %33, %34, %35, %37, %38, %39, %40 in 0 : vector<8x8xf32>, vector<8x8xf32>, vector<8x8xf32>, vector<8x8xf32>, vector<8x8xf32>, vector<8x8xf32>, vector<8x8xf32>, vector<8x8xf32> -> vector<64x8xf32>
    %42 = vector.shape_cast %41 : vector<64x8xf32> to vector<8x8x8xf32>
    %43 = vector.extract_strided_slice %16 {offsets = [0, 0], sizes = [8, 32], strides = [1, 1]} : vector<16x32xf32> to vector<8x32xf32>
    %44 = vector.extract_strided_slice %43 {offsets = [0, 0], sizes = [8, 8], strides = [1, 1]} : vector<8x32xf32> to vector<8x8xf32>
    %45 = vector.extract_strided_slice %43 {offsets = [0, 8], sizes = [8, 8], strides = [1, 1]} : vector<8x32xf32> to vector<8x8xf32>
    %46 = vector.extract_strided_slice %43 {offsets = [0, 16], sizes = [8, 8], strides = [1, 1]} : vector<8x32xf32> to vector<8x8xf32>
    %47 = vector.extract_strided_slice %43 {offsets = [0, 24], sizes = [8, 8], strides = [1, 1]} : vector<8x32xf32> to vector<8x8xf32>
    %48 = vector.extract_strided_slice %16 {offsets = [8, 0], sizes = [8, 32], strides = [1, 1]} : vector<16x32xf32> to vector<8x32xf32>
    %49 = vector.extract_strided_slice %48 {offsets = [0, 0], sizes = [8, 8], strides = [1, 1]} : vector<8x32xf32> to vector<8x8xf32>
    %50 = vector.extract_strided_slice %48 {offsets = [0, 8], sizes = [8, 8], strides = [1, 1]} : vector<8x32xf32> to vector<8x8xf32>
    %51 = vector.extract_strided_slice %48 {offsets = [0, 16], sizes = [8, 8], strides = [1, 1]} : vector<8x32xf32> to vector<8x8xf32>
    %52 = vector.extract_strided_slice %48 {offsets = [0, 24], sizes = [8, 8], strides = [1, 1]} : vector<8x32xf32> to vector<8x8xf32>
    %53 = tpu.concatenate %44, %45, %46, %47, %49, %50, %51, %52 in 0 : vector<8x8xf32>, vector<8x8xf32>, vector<8x8xf32>, vector<8x8xf32>, vector<8x8xf32>, vector<8x8xf32>, vector<8x8xf32>, vector<8x8xf32> -> vector<64x8xf32>
    %54 = vector.shape_cast %53 : vector<64x8xf32> to vector<8x8x8xf32>
    %55 = vector.broadcast %13 : vector<1x32xf32> to vector<16x32xf32>
    %56 = arith.addf %14, %55 : vector<16x32xf32>
    %57 = vector.extract_strided_slice %56 {offsets = [0, 0], sizes = [8, 32], strides = [1, 1]} : vector<16x32xf32> to vector<8x32xf32>
    %58 = vector.extract_strided_slice %57 {offsets = [0, 0], sizes = [8, 8], strides = [1, 1]} : vector<8x32xf32> to vector<8x8xf32>
    %59 = vector.extract_strided_slice %57 {offsets = [0, 8], sizes = [8, 8], strides = [1, 1]} : vector<8x32xf32> to vector<8x8xf32>
    %60 = vector.extract_strided_slice %57 {offsets = [0, 16], sizes = [8, 8], strides = [1, 1]} : vector<8x32xf32> to vector<8x8xf32>
    %61 = vector.extract_strided_slice %57 {offsets = [0, 24], sizes = [8, 8], strides = [1, 1]} : vector<8x32xf32> to vector<8x8xf32>
    %62 = vector.extract_strided_slice %56 {offsets = [8, 0], sizes = [8, 32], strides = [1, 1]} : vector<16x32xf32> to vector<8x32xf32>
    %63 = vector.extract_strided_slice %62 {offsets = [0, 0], sizes = [8, 8], strides = [1, 1]} : vector<8x32xf32> to vector<8x8xf32>
    %64 = vector.extract_strided_slice %62 {offsets = [0, 8], sizes = [8, 8], strides = [1, 1]} : vector<8x32xf32> to vector<8x8xf32>
    %65 = vector.extract_strided_slice %62 {offsets = [0, 16], sizes = [8, 8], strides = [1, 1]} : vector<8x32xf32> to vector<8x8xf32>
    %66 = vector.extract_strided_slice %62 {offsets = [0, 24], sizes = [8, 8], strides = [1, 1]} : vector<8x32xf32> to vector<8x8xf32>
    %67 = tpu.concatenate %58, %59, %60, %61, %63, %64, %65, %66 in 0 : vector<8x8xf32>, vector<8x8xf32>, vector<8x8xf32>, vector<8x8xf32>, vector<8x8xf32>, vector<8x8xf32>, vector<8x8xf32>, vector<8x8xf32> -> vector<64x8xf32>
    "tpu.trace_start"() <{level = 10 : i32, message = "hqd,hkd->hqk"}> : () -> ()
    %cst_16 = arith.constant dense<0.000000e+00> : vector<8x8x8xf32>
    %68 = tpu.matmul %30, %42, %cst_16 {dimension_numbers = #tpu.dot_dimension_numbers<[2], [2], [1], [1], [0, 0, 0, 1, 1, 1], [0], [0]>} : vector<8x8x8xf32>, vector<8x8x8xf32>, vector<8x8x8xf32> -> vector<8x8x8xf32>
    "tpu.trace_stop"() : () -> ()
    %cst_17 = arith.constant dense<0.000000e+00> : vector<64x16xf32>
    %69 = tpu.matmul %67, %3, %cst_17 {dimension_numbers = #tpu.dot_dimension_numbers<[1], [1], [0], [0], [0, 0, 1, 0], [], []>} : vector<64x8xf32>, vector<16x8xf32>, vector<64x16xf32> -> vector<64x16xf32>
    %70 = vector.shape_cast %69 : vector<64x16xf32> to vector<8x8x16xf32>
    %71 = vector.extract_strided_slice %70 {offsets = [0, 0, 8], sizes = [8, 1, 8], strides = [1, 1, 1]} : vector<8x8x16xf32> to vector<8x1x8xf32>
    %72 = vector.extract_strided_slice %70 {offsets = [0, 1, 7], sizes = [8, 1, 8], strides = [1, 1, 1]} : vector<8x8x16xf32> to vector<8x1x8xf32>
    %73 = vector.extract_strided_slice %70 {offsets = [0, 2, 6], sizes = [8, 1, 8], strides = [1, 1, 1]} : vector<8x8x16xf32> to vector<8x1x8xf32>
    %74 = vector.extract_strided_slice %70 {offsets = [0, 3, 5], sizes = [8, 1, 8], strides = [1, 1, 1]} : vector<8x8x16xf32> to vector<8x1x8xf32>
    %75 = vector.extract_strided_slice %70 {offsets = [0, 4, 4], sizes = [8, 1, 8], strides = [1, 1, 1]} : vector<8x8x16xf32> to vector<8x1x8xf32>
    %76 = vector.extract_strided_slice %70 {offsets = [0, 5, 3], sizes = [8, 1, 8], strides = [1, 1, 1]} : vector<8x8x16xf32> to vector<8x1x8xf32>
    %77 = vector.extract_strided_slice %70 {offsets = [0, 6, 2], sizes = [8, 1, 8], strides = [1, 1, 1]} : vector<8x8x16xf32> to vector<8x1x8xf32>
    %78 = vector.extract_strided_slice %70 {offsets = [0, 7, 1], sizes = [8, 1, 8], strides = [1, 1, 1]} : vector<8x8x16xf32> to vector<8x1x8xf32>
    %79 = tpu.concatenate %71, %72, %73, %74, %75, %76, %77, %78 in 1 : vector<8x1x8xf32>, vector<8x1x8xf32>, vector<8x1x8xf32>, vector<8x1x8xf32>, vector<8x1x8xf32>, vector<8x1x8xf32>, vector<8x1x8xf32>, vector<8x1x8xf32> -> vector<8x8x8xf32>
    %80 = arith.addf %68, %79 : vector<8x8x8xf32>
    %c0_18 = arith.constant 0 : index
    %c0_19 = arith.constant 0 : index
    %81 = vector.load %arg1[%c0_18, %c0_19] : memref<2x8xi32, #tpu.memory_space<vmem>>, vector<2x8xi32>
    %82 = vector.extract_strided_slice %81 {offsets = [0, 0], sizes = [1, 8], strides = [1, 1]} : vector<2x8xi32> to vector<1x8xi32>
    %83 = vector.extract_strided_slice %81 {offsets = [0, 0], sizes = [1, 8], strides = [1, 1]} : vector<2x8xi32> to vector<1x8xi32>
    %84 = vector.extract_strided_slice %81 {offsets = [0, 0], sizes = [1, 8], strides = [1, 1]} : vector<2x8xi32> to vector<1x8xi32>
    %85 = vector.extract_strided_slice %81 {offsets = [0, 0], sizes = [1, 8], strides = [1, 1]} : vector<2x8xi32> to vector<1x8xi32>
    %86 = vector.extract_strided_slice %81 {offsets = [1, 0], sizes = [1, 8], strides = [1, 1]} : vector<2x8xi32> to vector<1x8xi32>
    %87 = vector.extract_strided_slice %81 {offsets = [1, 0], sizes = [1, 8], strides = [1, 1]} : vector<2x8xi32> to vector<1x8xi32>
    %88 = vector.extract_strided_slice %81 {offsets = [1, 0], sizes = [1, 8], strides = [1, 1]} : vector<2x8xi32> to vector<1x8xi32>
    %89 = vector.extract_strided_slice %81 {offsets = [1, 0], sizes = [1, 8], strides = [1, 1]} : vector<2x8xi32> to vector<1x8xi32>
    %90 = tpu.concatenate %82, %83, %84, %85, %86, %87, %88, %89 in 0 : vector<1x8xi32>, vector<1x8xi32>, vector<1x8xi32>, vector<1x8xi32>, vector<1x8xi32>, vector<1x8xi32>, vector<1x8xi32>, vector<1x8xi32> -> vector<8x8xi32>
    %91 = vector.shape_cast %90 : vector<8x8xi32> to vector<8x1x8xi32>
    %c0_i32 = arith.constant 0 : i32
    %92 = vector.broadcast %c0_i32 : i32 to vector<8x1x8xi32>
    %93 = arith.cmpi eq, %91, %92 : vector<8x1x8xi32>
    %cst_20 = arith.constant 9.99999971E-10 : f32
    %94 = vector.shape_cast %93 : vector<8x1x8xi1> to vector<8x1x8xi1>
    %95 = vector.broadcast %94 : vector<8x1x8xi1> to vector<8x8x8xi1>
    %96 = vector.broadcast %cst_20 : f32 to vector<8x8x8xf32>
    %97 = arith.select %95, %96, %80 : vector<8x8x8xi1>, vector<8x8x8xf32>
    %cst_21 = arith.constant dense<0xFF800000> : vector<8x8xf32>
    %98 = vector.multi_reduction <maximumf>, %97, %cst_21 [2] : vector<8x8x8xf32> to vector<8x8xf32>
    %99 = vector.shape_cast %98 : vector<8x8xf32> to vector<8x8x1xf32>
    %100 = vector.broadcast %99 : vector<8x8x1xf32> to vector<8x8x8xf32>
    %101 = arith.subf %97, %100 : vector<8x8x8xf32>
    %102 = math.exp %101 : vector<8x8x8xf32>
    %cst_22 = arith.constant dense<0.000000e+00> : vector<8x8xf32>
    %103 = vector.multi_reduction <add>, %102, %cst_22 [2] : vector<8x8x8xf32> to vector<8x8xf32>
    %104 = vector.shape_cast %103 : vector<8x8xf32> to vector<8x8x1xf32>
    %105 = tpu.reciprocal %104 {approx = true} : vector<8x8x1xf32> -> vector<8x8x1xf32>
    %106 = vector.broadcast %105 : vector<8x8x1xf32> to vector<8x8x8xf32>
    %107 = arith.mulf %102, %106 : vector<8x8x8xf32>
    "tpu.trace_start"() <{level = 10 : i32, message = "hqk,hkd->hqd"}> : () -> ()
    %cst_23 = arith.constant dense<0.000000e+00> : vector<8x8x8xf32>
    %108 = tpu.matmul %107, %54, %cst_23 {dimension_numbers = #tpu.dot_dimension_numbers<[2], [1], [1], [2], [0, 0, 0, 1, 1, 2], [0], [0]>} : vector<8x8x8xf32>, vector<8x8x8xf32>, vector<8x8x8xf32> -> vector<8x8x8xf32>
    "tpu.trace_stop"() : () -> ()
    %109 = vector.extract_strided_slice %108 {offsets = [0, 0, 0], sizes = [1, 8, 8], strides = [1, 1, 1]} : vector<8x8x8xf32> to vector<1x8x8xf32>
    %110 = vector.shape_cast %109 : vector<1x8x8xf32> to vector<8x8xf32>
    %111 = vector.extract_strided_slice %108 {offsets = [1, 0, 0], sizes = [1, 8, 8], strides = [1, 1, 1]} : vector<8x8x8xf32> to vector<1x8x8xf32>
    %112 = vector.shape_cast %111 : vector<1x8x8xf32> to vector<8x8xf32>
    %113 = vector.extract_strided_slice %108 {offsets = [2, 0, 0], sizes = [1, 8, 8], strides = [1, 1, 1]} : vector<8x8x8xf32> to vector<1x8x8xf32>
    %114 = vector.shape_cast %113 : vector<1x8x8xf32> to vector<8x8xf32>
    %115 = vector.extract_strided_slice %108 {offsets = [3, 0, 0], sizes = [1, 8, 8], strides = [1, 1, 1]} : vector<8x8x8xf32> to vector<1x8x8xf32>
    %116 = vector.shape_cast %115 : vector<1x8x8xf32> to vector<8x8xf32>
    %117 = tpu.concatenate %110, %112, %114, %116 in 1 : vector<8x8xf32>, vector<8x8xf32>, vector<8x8xf32>, vector<8x8xf32> -> vector<8x32xf32>
    %118 = vector.extract_strided_slice %108 {offsets = [4, 0, 0], sizes = [1, 8, 8], strides = [1, 1, 1]} : vector<8x8x8xf32> to vector<1x8x8xf32>
    %119 = vector.shape_cast %118 : vector<1x8x8xf32> to vector<8x8xf32>
    %120 = vector.extract_strided_slice %108 {offsets = [5, 0, 0], sizes = [1, 8, 8], strides = [1, 1, 1]} : vector<8x8x8xf32> to vector<1x8x8xf32>
    %121 = vector.shape_cast %120 : vector<1x8x8xf32> to vector<8x8xf32>
    %122 = vector.extract_strided_slice %108 {offsets = [6, 0, 0], sizes = [1, 8, 8], strides = [1, 1, 1]} : vector<8x8x8xf32> to vector<1x8x8xf32>
    %123 = vector.shape_cast %122 : vector<1x8x8xf32> to vector<8x8xf32>
    %124 = vector.extract_strided_slice %108 {offsets = [7, 0, 0], sizes = [1, 8, 8], strides = [1, 1, 1]} : vector<8x8x8xf32> to vector<1x8x8xf32>
    %125 = vector.shape_cast %124 : vector<1x8x8xf32> to vector<8x8xf32>
    %126 = tpu.concatenate %119, %121, %123, %125 in 1 : vector<8x8xf32>, vector<8x8xf32>, vector<8x8xf32>, vector<8x8xf32> -> vector<8x32xf32>
    %127 = tpu.concatenate %117, %126 in 0 : vector<8x32xf32>, vector<8x32xf32> -> vector<16x32xf32>
    %128 = arith.addf %0, %127 : vector<16x32xf32>
    %cst_24 = arith.constant dense<0.000000e+00> : vector<16xf32>
    %129 = vector.multi_reduction <add>, %128, %cst_24 [1] : vector<16x32xf32> to vector<16xf32>
    %130 = vector.shape_cast %129 : vector<16xf32> to vector<16x1xf32>
    %cst_25 = arith.constant 3.200000e+01 : f32
    %131 = vector.broadcast %cst_25 : f32 to vector<16x1xf32>
    %132 = arith.divf %130, %131 : vector<16x1xf32>
    %133 = vector.broadcast %132 : vector<16x1xf32> to vector<16x32xf32>
    %134 = arith.subf %128, %133 : vector<16x32xf32>
    %135 = arith.mulf %134, %134 : vector<16x32xf32>
    %cst_26 = arith.constant dense<0.000000e+00> : vector<16xf32>
    %136 = vector.multi_reduction <add>, %135, %cst_26 [1] : vector<16x32xf32> to vector<16xf32>
    %137 = vector.shape_cast %136 : vector<16xf32> to vector<16x1xf32>
    %cst_27 = arith.constant 3.200000e+01 : f32
    %138 = vector.broadcast %cst_27 : f32 to vector<16x1xf32>
    %139 = arith.divf %137, %138 : vector<16x1xf32>
    %cst_28 = arith.constant 9.99999974E-6 : f32
    %140 = vector.broadcast %cst_28 : f32 to vector<16x1xf32>
    %141 = arith.addf %139, %140 : vector<16x1xf32>
    %142 = math.rsqrt %141 : vector<16x1xf32>
    %143 = vector.broadcast %142 : vector<16x1xf32> to vector<16x32xf32>
    %144 = arith.mulf %134, %143 : vector<16x32xf32>
    %145 = vector.broadcast %6 : vector<1x32xf32> to vector<16x32xf32>
    %146 = arith.mulf %144, %145 : vector<16x32xf32>
    %147 = vector.broadcast %7 : vector<1x32xf32> to vector<16x32xf32>
    %148 = arith.addf %146, %147 : vector<16x32xf32>
    %c0_29 = arith.constant 0 : index
    %c0_30 = arith.constant 0 : index
    %149 = vector.load %arg5[%c0_29, %c0_30] : memref<128x32xf32, #tpu.memory_space<vmem>>, vector<32x32xf32>
    %c32 = arith.constant 32 : index
    %c0_31 = arith.constant 0 : index
    %150 = vector.load %arg5[%c32, %c0_31] : memref<128x32xf32, #tpu.memory_space<vmem>>, vector<32x32xf32>
    %c64 = arith.constant 64 : index
    %c0_32 = arith.constant 0 : index
    %151 = vector.load %arg5[%c64, %c0_32] : memref<128x32xf32, #tpu.memory_space<vmem>>, vector<32x32xf32>
    %c96 = arith.constant 96 : index
    %c0_33 = arith.constant 0 : index
    %152 = vector.load %arg5[%c96, %c0_33] : memref<128x32xf32, #tpu.memory_space<vmem>>, vector<32x32xf32>
    %cst_34 = arith.constant dense<0.000000e+00> : vector<16x32xf32>
    %153 = tpu.matmul %148, %149, %cst_34 {dimension_numbers = #tpu.dot_dimension_numbers<[1], [0], [0], [1], [0, 0, 1, 1], [], []>} : vector<16x32xf32>, vector<32x32xf32>, vector<16x32xf32> -> vector<16x32xf32>
    %154 = vector.broadcast %4 : vector<1x32xf32> to vector<16x32xf32>
    %155 = arith.addf %153, %154 : vector<16x32xf32>
    %cst_35 = arith.constant 0.000000e+00 : f32
    %156 = vector.broadcast %cst_35 : f32 to vector<16x32xf32>
    %157 = arith.maximumf %155, %156 : vector<16x32xf32>
    %cst_36 = arith.constant dense<0.000000e+00> : vector<16x32xf32>
    %158 = tpu.matmul %157, %150, %cst_36 {dimension_numbers = #tpu.dot_dimension_numbers<[1], [0], [0], [1], [0, 0, 1, 1], [], []>} : vector<16x32xf32>, vector<32x32xf32>, vector<16x32xf32> -> vector<16x32xf32>
    %159 = vector.broadcast %5 : vector<1x32xf32> to vector<16x32xf32>
    %160 = arith.addf %158, %159 : vector<16x32xf32>
    %161 = arith.addf %148, %160 : vector<16x32xf32>
    %cst_37 = arith.constant dense<0.000000e+00> : vector<16xf32>
    %162 = vector.multi_reduction <add>, %161, %cst_37 [1] : vector<16x32xf32> to vector<16xf32>
    %163 = vector.shape_cast %162 : vector<16xf32> to vector<16x1xf32>
    %cst_38 = arith.constant 3.200000e+01 : f32
    %164 = vector.broadcast %cst_38 : f32 to vector<16x1xf32>
    %165 = arith.divf %163, %164 : vector<16x1xf32>
    %166 = vector.broadcast %165 : vector<16x1xf32> to vector<16x32xf32>
    %167 = arith.subf %161, %166 : vector<16x32xf32>
    %168 = arith.mulf %167, %167 : vector<16x32xf32>
    %cst_39 = arith.constant dense<0.000000e+00> : vector<16xf32>
    %169 = vector.multi_reduction <add>, %168, %cst_39 [1] : vector<16x32xf32> to vector<16xf32>
    %170 = vector.shape_cast %169 : vector<16xf32> to vector<16x1xf32>
    %cst_40 = arith.constant 3.200000e+01 : f32
    %171 = vector.broadcast %cst_40 : f32 to vector<16x1xf32>
    %172 = arith.divf %170, %171 : vector<16x1xf32>
    %cst_41 = arith.constant 9.99999974E-6 : f32
    %173 = vector.broadcast %cst_41 : f32 to vector<16x1xf32>
    %174 = arith.addf %172, %173 : vector<16x1xf32>
    %175 = math.rsqrt %174 : vector<16x1xf32>
    %176 = vector.broadcast %175 : vector<16x1xf32> to vector<16x32xf32>
    %177 = arith.mulf %167, %176 : vector<16x32xf32>
    %178 = vector.broadcast %8 : vector<1x32xf32> to vector<16x32xf32>
    %179 = arith.mulf %177, %178 : vector<16x32xf32>
    %180 = vector.broadcast %9 : vector<1x32xf32> to vector<16x32xf32>
    %181 = arith.addf %179, %180 : vector<16x32xf32>
    %c0_42 = arith.constant 0 : index
    %c0_43 = arith.constant 0 : index
    %182 = vector.load %arg2[%c0_42, %c0_43] : memref<16x1xi32, #tpu.memory_space<vmem>>, vector<16x1xi32>
    %c0_i32_44 = arith.constant 0 : i32
    %183 = vector.broadcast %c0_i32_44 : i32 to vector<16x1xi32>
    %184 = arith.cmpi eq, %182, %183 : vector<16x1xi32>
    %cst_45 = arith.constant 0xFF800000 : f32
    %185 = vector.shape_cast %184 : vector<16x1xi1> to vector<16x1xi1>
    %186 = vector.broadcast %185 : vector<16x1xi1> to vector<16x32xi1>
    %187 = vector.broadcast %cst_45 : f32 to vector<16x32xf32>
    %188 = arith.select %186, %187, %181 : vector<16x32xi1>, vector<16x32xf32>
    %189 = vector.extract_strided_slice %188 {offsets = [0, 0], sizes = [8, 32], strides = [1, 1]} : vector<16x32xf32> to vector<8x32xf32>
    %cst_46 = arith.constant dense<0xFF800000> : vector<32xf32>
    %190 = vector.multi_reduction <maximumf>, %189, %cst_46 [0] : vector<8x32xf32> to vector<32xf32>
    %191 = vector.shape_cast %190 : vector<32xf32> to vector<1x32xf32>
    %192 = vector.extract_strided_slice %188 {offsets = [8, 0], sizes = [8, 32], strides = [1, 1]} : vector<16x32xf32> to vector<8x32xf32>
    %cst_47 = arith.constant dense<0xFF800000> : vector<32xf32>
    %193 = vector.multi_reduction <maximumf>, %192, %cst_47 [0] : vector<8x32xf32> to vector<32xf32>
    %194 = vector.shape_cast %193 : vector<32xf32> to vector<1x32xf32>
    %195 = tpu.concatenate %191, %194 in 0 : vector<1x32xf32>, vector<1x32xf32> -> vector<2x32xf32>
    %cst_48 = arith.constant dense<0.000000e+00> : vector<2x32xf32>
    %196 = tpu.matmul %195, %151, %cst_48 {dimension_numbers = #tpu.dot_dimension_numbers<[1], [0], [0], [1], [0, 0, 1, 1], [], []>} : vector<2x32xf32>, vector<32x32xf32>, vector<2x32xf32> -> vector<2x32xf32>
    %197 = vector.broadcast %10 : vector<1x32xf32> to vector<2x32xf32>
    %198 = arith.addf %196, %197 : vector<2x32xf32>
    %cst_49 = arith.constant 5.000000e-01 : f32
    %199 = vector.broadcast %cst_49 : f32 to vector<2x32xf32>
    %200 = arith.mulf %199, %198 : vector<2x32xf32>
    %cst_50 = arith.constant 0.707106769 : f32
    %201 = vector.broadcast %cst_50 : f32 to vector<2x32xf32>
    %202 = arith.mulf %198, %201 : vector<2x32xf32>
    %203 = math.absf %202 : vector<2x32xf32>
    %cst_51 = arith.constant 0.327591091 : f32
    %204 = vector.broadcast %cst_51 : f32 to vector<2x32xf32>
    %205 = arith.mulf %204, %203 : vector<2x32xf32>
    %cst_52 = arith.constant 1.000000e+00 : f32
    %206 = vector.broadcast %cst_52 : f32 to vector<2x32xf32>
    %207 = arith.addf %206, %205 : vector<2x32xf32>
    %cst_53 = arith.constant 1.000000e+00 : f32
    %208 = vector.broadcast %cst_53 : f32 to vector<2x32xf32>
    %209 = arith.divf %208, %207 : vector<2x32xf32>
    %cst_54 = arith.constant 1.06140542 : f32
    %210 = vector.broadcast %cst_54 : f32 to vector<2x32xf32>
    %211 = arith.mulf %210, %209 : vector<2x32xf32>
    %cst_55 = arith.constant -1.45315206 : f32
    %212 = vector.broadcast %cst_55 : f32 to vector<2x32xf32>
    %213 = arith.addf %211, %212 : vector<2x32xf32>
    %214 = arith.mulf %213, %209 : vector<2x32xf32>
    %cst_56 = arith.constant 1.42141378 : f32
    %215 = vector.broadcast %cst_56 : f32 to vector<2x32xf32>
    %216 = arith.addf %214, %215 : vector<2x32xf32>
    %217 = arith.mulf %216, %209 : vector<2x32xf32>
    %cst_57 = arith.constant -0.284496725 : f32
    %218 = vector.broadcast %cst_57 : f32 to vector<2x32xf32>
    %219 = arith.addf %217, %218 : vector<2x32xf32>
    %220 = arith.mulf %219, %209 : vector<2x32xf32>
    %cst_58 = arith.constant 0.254829586 : f32
    %221 = vector.broadcast %cst_58 : f32 to vector<2x32xf32>
    %222 = arith.addf %220, %221 : vector<2x32xf32>
    %223 = arith.mulf %222, %209 : vector<2x32xf32>
    %cst_59 = arith.constant 0.000000e+00 : f32
    %224 = vector.broadcast %cst_59 : f32 to vector<2x32xf32>
    %225 = arith.subf %224, %203 : vector<2x32xf32>
    %226 = arith.mulf %225, %203 : vector<2x32xf32>
    %227 = math.exp %226 : vector<2x32xf32>
    %228 = arith.mulf %223, %227 : vector<2x32xf32>
    %cst_60 = arith.constant 1.000000e+00 : f32
    %229 = vector.broadcast %cst_60 : f32 to vector<2x32xf32>
    %230 = arith.subf %229, %228 : vector<2x32xf32>
    %cst_61 = arith.constant 0.000000e+00 : f32
    %231 = vector.broadcast %cst_61 : f32 to vector<2x32xf32>
    %232 = arith.cmpf oge, %202, %231 : vector<2x32xf32>
    %cst_62 = arith.constant 0.000000e+00 : f32
    %233 = vector.broadcast %cst_62 : f32 to vector<2x32xf32>
    %234 = arith.subf %233, %230 : vector<2x32xf32>
    %235 = arith.select %232, %230, %234 : vector<2x32xi1>, vector<2x32xf32>
    %cst_63 = arith.constant 1.000000e+00 : f32
    %236 = vector.broadcast %cst_63 : f32 to vector<2x32xf32>
    %237 = arith.addf %236, %235 : vector<2x32xf32>
    %238 = arith.mulf %200, %237 : vector<2x32xf32>
    %cst_64 = arith.constant dense<0.000000e+00> : vector<2x32xf32>
    %239 = tpu.matmul %238, %152, %cst_64 {dimension_numbers = #tpu.dot_dimension_numbers<[1], [0], [0], [1], [0, 0, 1, 1], [], []>} : vector<2x32xf32>, vector<32x32xf32>, vector<2x32xf32> -> vector<2x32xf32>
    %240 = vector.broadcast %11 : vector<1x32xf32> to vector<2x32xf32>
    %241 = arith.addf %239, %240 : vector<2x32xf32>
    %c0_65 = arith.constant 0 : index
    %c0_66 = arith.constant 0 : index
    %242 = vector.load %arg7[%c0_65, %c0_66] : memref<2x32xf32, #tpu.memory_space<vmem>>, vector<2x32xf32>
    tpu.vector_store %arg7[%c0_65, %c0_66], %241 {strides = array<i32>} : memref<2x32xf32, #tpu.memory_space<vmem>>, vector<2x32xf32>,
    return
  }
}

</mosaic_0001>

<llo_original>
// kernel: encoder_forward.1
$region0: #{encoder_forward.1}
  #allocation0 [shape = 'u32[]', space=smem, size = 0x4, offset = 0x4, fixed_abs, tag = 'smem constant byte address 0x4 - core index']
  #allocation1 [shape = 'u32[72,128]{1,0:T(1,128)}', space=vmem, size = 0x9000, scoped, tag = 'internal scratch']
  %s0 = inlined_call_operand.vmem [shape: f32[16,32], index: 0, kind: input, shape index: {}]
  %s1 = inlined_call_operand.vmem [shape: s32[2,8], index: 1, kind: input, shape index: {}]
  %s2 = inlined_call_operand.vmem [shape: s32[16,1], index: 2, kind: input, shape index: {}]
  %s3 = inlined_call_operand.vmem [shape: f32[32,96], index: 3, kind: input, shape index: {}]
  %s4 = inlined_call_operand.vmem [shape: f32[16,8], index: 4, kind: input, shape index: {}]
  %s5 = inlined_call_operand.vmem [shape: f32[128,32], index: 5, kind: input, shape index: {}]
  %s6 = inlined_call_operand.vmem [shape: f32[10,32], index: 6, kind: input, shape index: {}]
  %s7 = inlined_call_operand.hbm [shape: f32[2,32], index: 7, kind: output, shape index: {}]
  %s8 = sld [smem:[#allocation0]]
  $region38: #{encoder_forward.1} parent=0
    _
  %s10 = ssub.s32 1, %s8
  %s11 = scalar_select 0, %s10, %s8
  $region1: #{encoder_forward.1} parent=0
    #allocation2 [shape = 'u8[1024]{0}', space=vmem, size = 0x400, scoped, tag = 'output window, operand 0, single buffered']
    #allocation3 [shape = 's32[1]{0}', space=sflag, size = 0x4, scoped, tag = 'scoped memory for encoder_forward.1']
    %12 = vsyncpa [#allocation3], 0
    // Predicated region
    $region2: #{encoder_forward.1} parent=1 // pred_check
      _
    $region3: #{encoder_forward.1} parent=1 // pred_check_branch
      %14 = sbr.rel (0) target = $region5
    $region4: #{encoder_forward.1} parent=1 // pred_region
      _
    $region5: #{encoder_forward.1} parent=1 // pred_fallthru
      _
    // Predicated region
    $region6: #{encoder_forward.1} parent=1 // pred_check
      _
    $region7: #{encoder_forward.1} parent=1 // pred_check_branch
      %16 = sbr.rel (0) target = $region9
    $region8: #{encoder_forward.1} parent=1 // pred_region
      _
    $region9: #{encoder_forward.1} parent=1 // pred_fallthru
      _
    // Predicated region
    $region10: #{encoder_forward.1} parent=1 // pred_check
      _
    $region11: #{encoder_forward.1} parent=1 // pred_check_branch
      %18 = sbr.rel (0) target = $region13
    $region12: #{encoder_forward.1} parent=1 // pred_region
      _
    $region13: #{encoder_forward.1} parent=1 // pred_fallthru
      _
    // Predicated region
    $region14: #{encoder_forward.1} parent=1 // pred_check
      _
    $region15: #{encoder_forward.1} parent=1 // pred_check_branch
      %20 = sbr.rel (0) target = $region17
    $region16: #{encoder_forward.1} parent=1 // pred_region
      _
    $region17: #{encoder_forward.1} parent=1 // pred_fallthru
      _
    // Predicated region
    $region18: #{encoder_forward.1} parent=1 // pred_check
      _
    $region19: #{encoder_forward.1} parent=1 // pred_check_branch
      %22 = sbr.rel (0) target = $region21
    $region20: #{encoder_forward.1} parent=1 // pred_region
      _
    $region21: #{encoder_forward.1} parent=1 // pred_fallthru
      _
    // Predicated region
    $region22: #{encoder_forward.1} parent=1 // pred_check
      _
    $region23: #{encoder_forward.1} parent=1 // pred_check_branch
      %24 = sbr.rel (0) target = $region25
    $region24: #{encoder_forward.1} parent=1 // pred_region
      _
    $region25: #{encoder_forward.1} parent=1 // pred_fallthru
      _
    // Predicated region
    $region26: #{encoder_forward.1} parent=1 // pred_check
      _
    $region27: #{encoder_forward.1} parent=1 // pred_check_branch
      %26 = sbr.rel (0) target = $region29
    $region28: #{encoder_forward.1} parent=1 // pred_region
      _
    $region29: #{encoder_forward.1} parent=1 // pred_fallthru
      _
    %v27 = vld [vmem:[%s0] sm:$0xff]
    %v28 = vld [vmem:[%s0 + $0x8] sm:$0xff]
    %v29 = vld [vmem:[%s3] sm:$0xff]
    %v30 = vld [vmem:[%s3 + $0x8] sm:$0xff]
    %v31 = vld [vmem:[%s3 + $0x10] sm:$0xff]
    %v32 = vld [vmem:[%s3 + $0x18] sm:$0xff]
    %vm33 = vcmask 261120
    %v35 = vsel %vm33, %v27, 0
    %v38 = vsel %vm33, %v28, 0
    %40 = vmatpush.msra.mxu0 0.0
    %41 = vmatpush.msra.mxu0 0.0
    %42 = vmatpush.msra.mxu0 0.0
    %43 = vmatpush.msra.mxu0 0.0
    %44 = vmatpush.msra.mxu0 0.0
    %45 = vmatpush.msra.mxu0 0.0
    %46 = vmatpush.msra.mxu0 0.0
    %47 = vmatpush.msra.mxu0 0.0
    %48 = vmatpush.msra.mxu0 0.0
    %49 = vmatpush.msra.mxu0 0.0
    %50 = vmatpush.msra.mxu0 0.0
    %51 = vmatpush.msra.mxu0 0.0
    %52 = vmatpush.msra.mxu0 %v32
    %53 = vmatpush.msra.mxu0 %v31
    %54 = vmatpush.msra.mxu0 %v30
    %55 = vmatpush.msra.mxu0 %v29
    %56 = vmatmul.f32.gmra.mxu0 %v35
    %v57 = vpop.f32.mrf.mxu0
    %v58 = vadd.f32 0.0, %v57
    %59 = vmatmul.f32.gmra.mxu0 %v38
    %v60 = vpop.f32.mrf.mxu0
    %v61 = vadd.f32 0.0, %v60
    %62 = vdwg.mxu0
    %v63 = vld [vmem:[%s4] sm:$0xff]
    %v64 = vld [vmem:[%s4 + $0x8] sm:$0xff]
    %v65 = vld [vmem:[%s6] sm:$0x1]
    %v66 = vld [vmem:[%s6 + $0x1] sm:$0x1]
    %v67 = vld [vmem:[%s6 + $0x2] sm:$0x1]
    %v68 = vld [vmem:[%s6 + $0x3] sm:$0x1]
    %v69 = vld [vmem:[%s6 + $0x4] sm:$0x1]
    %v70 = vld [vmem:[%s6 + $0x5] sm:$0x1]
    %v71 = vld [vmem:[%s6 + $0x6] sm:$0x1]
    %v72 = vld [vmem:[%s6 + $0x7] sm:$0x1]
    %v73 = vld [vmem:[%s6 + $0x8] sm:$0x1]
    %v74 = vld [vmem:[%s6 + $0x9] sm:$0x1]
    %v75 = vperm.slane %v73, 0
    %v76 = vadd.f32 %v58, %v75
    %v77 = vadd.f32 %v61, %v75
    %79 = vrot.lane.b32.xlu0 %v76, 120
    %v80 = vpop.permute.xlu0 %79
    %81 = vrot.lane.b32.xlu0 %v76, 112
    %v82 = vpop.permute.xlu0 %81
    %83 = vrot.lane.b32.xlu0 %v76, 104
    %v84 = vpop.permute.xlu0 %83
    %86 = vrot.lane.b32.xlu0 %v77, 120
    %v87 = vpop.permute.xlu0 %86
    %88 = vrot.lane.b32.xlu0 %v77, 112
    %v89 = vpop.permute.xlu0 %88
    %90 = vrot.lane.b32.xlu0 %v77, 104
    %v91 = vpop.permute.xlu0 %90
    %93 = vrot.lane.b32.xlu0 %v58, 120
    %v94 = vpop.permute.xlu0 %93
    %95 = vrot.lane.b32.xlu0 %v58, 112
    %v96 = vpop.permute.xlu0 %95
    %97 = vrot.lane.b32.xlu0 %v58, 104
    %v98 = vpop.permute.xlu0 %97
    %100 = vrot.lane.b32.xlu0 %v61, 120
    %v101 = vpop.permute.xlu0 %100
    %102 = vrot.lane.b32.xlu0 %v61, 112
    %v103 = vpop.permute.xlu0 %102
    %104 = vrot.lane.b32.xlu0 %v61, 104
    %v105 = vpop.permute.xlu0 %104
    %v106 = vperm.slane %v74, 0
    %v107 = vadd.f32 %v58, %v106
    %v108 = vadd.f32 %v61, %v106
    %110 = vrot.lane.b32.xlu0 %v107, 120
    %v111 = vpop.permute.xlu0 %110
    %112 = vrot.lane.b32.xlu0 %v107, 112
    %v113 = vpop.permute.xlu0 %112
    %114 = vrot.lane.b32.xlu0 %v107, 104
    %v115 = vpop.permute.xlu0 %114
    %117 = vrot.lane.b32.xlu0 %v108, 120
    %v118 = vpop.permute.xlu0 %117
    %119 = vrot.lane.b32.xlu0 %v108, 112
    %v120 = vpop.permute.xlu0 %119
    %121 = vrot.lane.b32.xlu0 %v108, 104
    %v122 = vpop.permute.xlu0 %121
    %vm123 = vcmask 64512
    %v124 = vsel %vm123, %v107, 0
    %v126 = vsel %vm123, %v111, 0
    %v128 = vsel %vm123, %v113, 0
    %v130 = vsel %vm123, %v115, 0
    %v132 = vsel %vm123, %v108, 0
    %v134 = vsel %vm123, %v118, 0
    %v136 = vsel %vm123, %v120, 0
    %v138 = vsel %vm123, %v122, 0
    %v141 = vsel %vm123, %v63, 0
    %v144 = vsel %vm123, %v64, 0
    %146 = vmatpush.xpose.msra.mxu0 0.0
    %147 = vmatpush.xpose.msra.mxu0 0.0
    %148 = vmatpush.xpose.msra.mxu0 0.0
    %149 = vmatpush.xpose.msra.mxu0 0.0
    %150 = vmatpush.xpose.msra.mxu0 0.0
    %151 = vmatpush.xpose.msra.mxu0 0.0
    %152 = vmatpush.xpose.msra.mxu0 0.0
    %153 = vmatpush.xpose.msra.mxu0 0.0
    %154 = vmatpush.xpose.msra.mxu0 0.0
    %155 = vmatpush.xpose.msra.mxu0 0.0
    %156 = vmatpush.xpose.msra.mxu0 0.0
    %157 = vmatpush.xpose.msra.mxu0 0.0
    %158 = vmatpush.xpose.msra.mxu0 0.0
    %159 = vmatpush.xpose.msra.mxu0 0.0
    %160 = vmatpush.xpose.msra.mxu0 %v144
    %161 = vmatpush.xpose.msra.mxu0 %v141
    %162 = vmatmul.f32.gmra.mxu0 %v124
    %v163 = vpop.f32.mrf.mxu0
    %v164 = vadd.f32 0.0, %v163
    %165 = vmatmul.f32.gmra.mxu0 %v126
    %v166 = vpop.f32.mrf.mxu0
    %v167 = vadd.f32 0.0, %v166
    %168 = vmatmul.f32.gmra.mxu0 %v128
    %v169 = vpop.f32.mrf.mxu0
    %v170 = vadd.f32 0.0, %v169
    %171 = vmatmul.f32.gmra.mxu0 %v130
    %v172 = vpop.f32.mrf.mxu0
    %v173 = vadd.f32 0.0, %v172
    %174 = vmatmul.f32.gmra.mxu0 %v132
    %v175 = vpop.f32.mrf.mxu0
    %v176 = vadd.f32 0.0, %v175
    %177 = vmatmul.f32.gmra.mxu0 %v134
    %v178 = vpop.f32.mrf.mxu0
    %v179 = vadd.f32 0.0, %v178
    %180 = vmatmul.f32.gmra.mxu0 %v136
    %v181 = vpop.f32.mrf.mxu0
    %v182 = vadd.f32 0.0, %v181
    %183 = vmatmul.f32.gmra.mxu0 %v138
    %v184 = vpop.f32.mrf.mxu0
    %v185 = vadd.f32 0.0, %v184
    %186 = vdwg.mxu0
    %195 = vrot.lane.b32.xlu0 %v164, 1
    %v196 = vpop.permute.xlu0 %195
    %197 = vrot.lane.b32.xlu0 %v167, 1
    %v198 = vpop.permute.xlu0 %197
    %199 = vrot.lane.b32.xlu0 %v170, 1
    %v200 = vpop.permute.xlu0 %199
    %201 = vrot.lane.b32.xlu0 %v173, 1
    %v202 = vpop.permute.xlu0 %201
    %203 = vrot.lane.b32.xlu0 %v176, 1
    %v204 = vpop.permute.xlu0 %203
    %205 = vrot.lane.b32.xlu0 %v179, 1
    %v206 = vpop.permute.xlu0 %205
    %207 = vrot.lane.b32.xlu0 %v182, 1
    %v208 = vpop.permute.xlu0 %207
    %209 = vrot.lane.b32.xlu0 %v185, 1
    %v210 = vpop.permute.xlu0 %209
    %219 = vrot.lane.b32.xlu0 %v164, 2
    %v220 = vpop.permute.xlu0 %219
    %221 = vrot.lane.b32.xlu0 %v167, 2
    %v222 = vpop.permute.xlu0 %221
    %223 = vrot.lane.b32.xlu0 %v170, 2
    %v224 = vpop.permute.xlu0 %223
    %225 = vrot.lane.b32.xlu0 %v173, 2
    %v226 = vpop.permute.xlu0 %225
    %227 = vrot.lane.b32.xlu0 %v176, 2
    %v228 = vpop.permute.xlu0 %227
    %229 = vrot.lane.b32.xlu0 %v179, 2
    %v230 = vpop.permute.xlu0 %229
    %231 = vrot.lane.b32.xlu0 %v182, 2
    %v232 = vpop.permute.xlu0 %231
    %233 = vrot.lane.b32.xlu0 %v185, 2
    %v234 = vpop.permute.xlu0 %233
    %243 = vrot.lane.b32.xlu0 %v164, 3
    %v244 = vpop.permute.xlu0 %243
    %245 = vrot.lane.b32.xlu0 %v167, 3
    %v246 = vpop.permute.xlu0 %245
    %247 = vrot.lane.b32.xlu0 %v170, 3
    %v248 = vpop.permute.xlu0 %247
    %249 = vrot.lane.b32.xlu0 %v173, 3
    %v250 = vpop.permute.xlu0 %249
    %251 = vrot.lane.b32.xlu0 %v176, 3
    %v252 = vpop.permute.xlu0 %251
    %253 = vrot.lane.b32.xlu0 %v179, 3
    %v254 = vpop.permute.xlu0 %253
    %255 = vrot.lane.b32.xlu0 %v182, 3
    %v256 = vpop.permute.xlu0 %255
    %257 = vrot.lane.b32.xlu0 %v185, 3
    %v258 = vpop.permute.xlu0 %257
    %267 = vrot.lane.b32.xlu0 %v164, 4
    %v268 = vpop.permute.xlu0 %267
    %269 = vrot.lane.b32.xlu0 %v167, 4
    %v270 = vpop.permute.xlu0 %269
    %271 = vrot.lane.b32.xlu0 %v170, 4
    %v272 = vpop.permute.xlu0 %271
    %273 = vrot.lane.b32.xlu0 %v173, 4
    %v274 = vpop.permute.xlu0 %273
    %275 = vrot.lane.b32.xlu0 %v176, 4
    %v276 = vpop.permute.xlu0 %275
    %277 = vrot.lane.b32.xlu0 %v179, 4
    %v278 = vpop.permute.xlu0 %277
    %279 = vrot.lane.b32.xlu0 %v182, 4
    %v280 = vpop.permute.xlu0 %279
    %281 = vrot.lane.b32.xlu0 %v185, 4
    %v282 = vpop.permute.xlu0 %281
    %291 = vrot.lane.b32.xlu0 %v164, 5
    %v292 = vpop.permute.xlu0 %291
    %293 = vrot.lane.b32.xlu0 %v167, 5
    %v294 = vpop.permute.xlu0 %293
    %295 = vrot.lane.b32.xlu0 %v170, 5
    %v296 = vpop.permute.xlu0 %295
    %297 = vrot.lane.b32.xlu0 %v173, 5
    %v298 = vpop.permute.xlu0 %297
    %299 = vrot.lane.b32.xlu0 %v176, 5
    %v300 = vpop.permute.xlu0 %299
    %301 = vrot.lane.b32.xlu0 %v179, 5
    %v302 = vpop.permute.xlu0 %301
    %303 = vrot.lane.b32.xlu0 %v182, 5
    %v304 = vpop.permute.xlu0 %303
    %305 = vrot.lane.b32.xlu0 %v185, 5
    %v306 = vpop.permute.xlu0 %305
    %315 = vrot.lane.b32.xlu0 %v164, 6
    %v316 = vpop.permute.xlu0 %315
    %317 = vrot.lane.b32.xlu0 %v167, 6
    %v318 = vpop.permute.xlu0 %317
    %319 = vrot.lane.b32.xlu0 %v170, 6
    %v320 = vpop.permute.xlu0 %319
    %321 = vrot.lane.b32.xlu0 %v173, 6
    %v322 = vpop.permute.xlu0 %321
    %323 = vrot.lane.b32.xlu0 %v176, 6
    %v324 = vpop.permute.xlu0 %323
    %325 = vrot.lane.b32.xlu0 %v179, 6
    %v326 = vpop.permute.xlu0 %325
    %327 = vrot.lane.b32.xlu0 %v182, 6
    %v328 = vpop.permute.xlu0 %327
    %329 = vrot.lane.b32.xlu0 %v185, 6
    %v330 = vpop.permute.xlu0 %329
    %339 = vrot.lane.b32.xlu0 %v164, 7
    %v340 = vpop.permute.xlu0 %339
    %341 = vrot.lane.b32.xlu0 %v167, 7
    %v342 = vpop.permute.xlu0 %341
    %343 = vrot.lane.b32.xlu0 %v170, 7
    %v344 = vpop.permute.xlu0 %343
    %345 = vrot.lane.b32.xlu0 %v173, 7
    %v346 = vpop.permute.xlu0 %345
    %347 = vrot.lane.b32.xlu0 %v176, 7
    %v348 = vpop.permute.xlu0 %347
    %349 = vrot.lane.b32.xlu0 %v179, 7
    %v350 = vpop.permute.xlu0 %349
    %351 = vrot.lane.b32.xlu0 %v182, 7
    %v352 = vpop.permute.xlu0 %351
    %353 = vrot.lane.b32.xlu0 %v185, 7
    %v354 = vpop.permute.xlu0 %353
    %vm363 = vcmask 1040384
    %v364 = vsel %vm363, %v164, %v196
    %v365 = vsel %vm363, %v167, %v198
    %v366 = vsel %vm363, %v170, %v200
    %v367 = vsel %vm363, %v173, %v202
    %v368 = vsel %vm363, %v176, %v204
    %v369 = vsel %vm363, %v179, %v206
    %v370 = vsel %vm363, %v182, %v208
    %v371 = vsel %vm363, %v185, %v210
    %vm372 = vcmask 1041408
    %v373 = vsel %vm372, %v364, %v220
    %v374 = vsel %vm372, %v365, %v222
    %v375 = vsel %vm372, %v366, %v224
    %v376 = vsel %vm372, %v367, %v226
    %v377 = vsel %vm372, %v368, %v228
    %v378 = vsel %vm372, %v369, %v230
    %v379 = vsel %vm372, %v370, %v232
    %v380 = vsel %vm372, %v371, %v234
    %vm381 = vcmask 1042432
    %v382 = vsel %vm381, %v373, %v244
    %v383 = vsel %vm381, %v374, %v246
    %v384 = vsel %vm381, %v375, %v248
    %v385 = vsel %vm381, %v376, %v250
    %v386 = vsel %vm381, %v377, %v252
    %v387 = vsel %vm381, %v378, %v254
    %v388 = vsel %vm381, %v379, %v256
    %v389 = vsel %vm381, %v380, %v258
    %vm390 = vcmask 1043456
    %v391 = vsel %vm390, %v382, %v268
    %v392 = vsel %vm390, %v383, %v270
    %v393 = vsel %vm390, %v384, %v272
    %v394 = vsel %vm390, %v385, %v274
    %v395 = vsel %vm390, %v386, %v276
    %v396 = vsel %vm390, %v387, %v278
    %v397 = vsel %vm390, %v388, %v280
    %v398 = vsel %vm390, %v389, %v282
    %vm399 = vcmask 1044480
    %v400 = vsel %vm399, %v391, %v292
    %v401 = vsel %vm399, %v392, %v294
    %v402 = vsel %vm399, %v393, %v296
    %v403 = vsel %vm399, %v394, %v298
    %v404 = vsel %vm399, %v395, %v300
    %v405 = vsel %vm399, %v396, %v302
    %v406 = vsel %vm399, %v397, %v304
    %v407 = vsel %vm399, %v398, %v306
    %vm408 = vcmask 1045504
    %v409 = vsel %vm408, %v400, %v316
    %v410 = vsel %vm408, %v401, %v318
    %v411 = vsel %vm408, %v402, %v320
    %v412 = vsel %vm408, %v403, %v322
    %v413 = vsel %vm408, %v404, %v324
    %v414 = vsel %vm408, %v405, %v326
    %v415 = vsel %vm408, %v406, %v328
    %v416 = vsel %vm408, %v407, %v330
    %vm417 = vcmask 1046528
    %v418 = vsel %vm417, %v409, %v340
    %v419 = vsel %vm417, %v410, %v342
    %v420 = vsel %vm417, %v411, %v344
    %v421 = vsel %vm417, %v412, %v346
    %v422 = vsel %vm417, %v413, %v348
    %v423 = vsel %vm417, %v414, %v350
    %v424 = vsel %vm417, %v415, %v352
    %v425 = vsel %vm417, %v416, %v354
    %426 = vrot.lane.b32.xlu0 %v58, 96
    %v427 = vpop.permute.xlu0 %426
    %429 = vrot.lane.b32.xlu0 %v418, 120
    %v430 = vpop.permute.xlu0 %429
    %v432 = vsel %vm123, %v76, 0
    %v434 = vsel %vm123, %v427, 0
    %436 = vmatpush.xpose.msra.mxu0 0.0
    %437 = vmatpush.xpose.msra.mxu0 0.0
    %438 = vmatpush.xpose.msra.mxu0 0.0
    %439 = vmatpush.xpose.msra.mxu0 0.0
    %440 = vmatpush.xpose.msra.mxu0 0.0
    %441 = vmatpush.xpose.msra.mxu0 0.0
    %442 = vmatpush.xpose.msra.mxu0 0.0
    %443 = vmatpush.xpose.msra.mxu0 0.0
    %444 = vmatpush.xpose.msra.mxu0 0.0
    %445 = vmatpush.xpose.msra.mxu0 0.0
    %446 = vmatpush.xpose.msra.mxu0 0.0
    %447 = vmatpush.xpose.msra.mxu0 0.0
    %448 = vmatpush.xpose.msra.mxu0 0.0
    %449 = vmatpush.xpose.msra.mxu0 0.0
    %450 = vmatpush.xpose.msra.mxu0 0.0
    %451 = vmatpush.xpose.msra.mxu0 %v434
    %452 = vmatmul.f32.gmra.mxu0 %v432
    %v453 = vpop.f32.mrf.mxu0
    %v454 = vadd.f32 %v430, %v453
    %455 = vdwg.mxu0
    %456 = vrot.lane.b32.xlu0 %v94, 96
    %v457 = vpop.permute.xlu0 %456
    %459 = vrot.lane.b32.xlu0 %v419, 120
    %v460 = vpop.permute.xlu0 %459
    %v462 = vsel %vm123, %v80, 0
    %v464 = vsel %vm123, %v457, 0
    %466 = vmatpush.xpose.msra.mxu0 0.0
    %467 = vmatpush.xpose.msra.mxu0 0.0
    %468 = vmatpush.xpose.msra.mxu0 0.0
    %469 = vmatpush.xpose.msra.mxu0 0.0
    %470 = vmatpush.xpose.msra.mxu0 0.0
    %471 = vmatpush.xpose.msra.mxu0 0.0
    %472 = vmatpush.xpose.msra.mxu0 0.0
    %473 = vmatpush.xpose.msra.mxu0 0.0
    %474 = vmatpush.xpose.msra.mxu0 0.0
    %475 = vmatpush.xpose.msra.mxu0 0.0
    %476 = vmatpush.xpose.msra.mxu0 0.0
    %477 = vmatpush.xpose.msra.mxu0 0.0
    %478 = vmatpush.xpose.msra.mxu0 0.0
    %479 = vmatpush.xpose.msra.mxu0 0.0
    %480 = vmatpush.xpose.msra.mxu0 0.0
    %481 = vmatpush.xpose.msra.mxu0 %v464
    %482 = vmatmul.f32.gmra.mxu0 %v462
    %v483 = vpop.f32.mrf.mxu0
    %v484 = vadd.f32 %v460, %v483
    %485 = vdwg.mxu0
    %486 = vrot.lane.b32.xlu0 %v96, 96
    %v487 = vpop.permute.xlu0 %486
    %489 = vrot.lane.b32.xlu0 %v420, 120
    %v490 = vpop.permute.xlu0 %489
    %v492 = vsel %vm123, %v82, 0
    %v494 = vsel %vm123, %v487, 0
    %496 = vmatpush.xpose.msra.mxu0 0.0
    %497 = vmatpush.xpose.msra.mxu0 0.0
    %498 = vmatpush.xpose.msra.mxu0 0.0
    %499 = vmatpush.xpose.msra.mxu0 0.0
    %500 = vmatpush.xpose.msra.mxu0 0.0
    %501 = vmatpush.xpose.msra.mxu0 0.0
    %502 = vmatpush.xpose.msra.mxu0 0.0
    %503 = vmatpush.xpose.msra.mxu0 0.0
    %504 = vmatpush.xpose.msra.mxu0 0.0
    %505 = vmatpush.xpose.msra.mxu0 0.0
    %506 = vmatpush.xpose.msra.mxu0 0.0
    %507 = vmatpush.xpose.msra.mxu0 0.0
    %508 = vmatpush.xpose.msra.mxu0 0.0
    %509 = vmatpush.xpose.msra.mxu0 0.0
    %510 = vmatpush.xpose.msra.mxu0 0.0
    %511 = vmatpush.xpose.msra.mxu0 %v494
    %512 = vmatmul.f32.gmra.mxu0 %v492
    %v513 = vpop.f32.mrf.mxu0
    %v514 = vadd.f32 %v490, %v513
    %515 = vdwg.mxu0
    %516 = vrot.lane.b32.xlu0 %v98, 96
    %v517 = vpop.permute.xlu0 %516
    %519 = vrot.lane.b32.xlu0 %v421, 120
    %v520 = vpop.permute.xlu0 %519
    %v522 = vsel %vm123, %v84, 0
    %v524 = vsel %vm123, %v517, 0
    %526 = vmatpush.xpose.msra.mxu0 0.0
    %527 = vmatpush.xpose.msra.mxu0 0.0
    %528 = vmatpush.xpose.msra.mxu0 0.0
    %529 = vmatpush.xpose.msra.mxu0 0.0
    %530 = vmatpush.xpose.msra.mxu0 0.0
    %531 = vmatpush.xpose.msra.mxu0 0.0
    %532 = vmatpush.xpose.msra.mxu0 0.0
    %533 = vmatpush.xpose.msra.mxu0 0.0
    %534 = vmatpush.xpose.msra.mxu0 0.0
    %535 = vmatpush.xpose.msra.mxu0 0.0
    %536 = vmatpush.xpose.msra.mxu0 0.0
    %537 = vmatpush.xpose.msra.mxu0 0.0
    %538 = vmatpush.xpose.msra.mxu0 0.0
    %539 = vmatpush.xpose.msra.mxu0 0.0
    %540 = vmatpush.xpose.msra.mxu0 0.0
    %541 = vmatpush.xpose.msra.mxu0 %v524
    %542 = vmatmul.f32.gmra.mxu0 %v522
    %v543 = vpop.f32.mrf.mxu0
    %v544 = vadd.f32 %v520, %v543
    %545 = vdwg.mxu0
    %546 = vrot.lane.b32.xlu0 %v61, 96
    %v547 = vpop.permute.xlu0 %546
    %549 = vrot.lane.b32.xlu0 %v422, 120
    %v550 = vpop.permute.xlu0 %549
    %v552 = vsel %vm123, %v77, 0
    %v554 = vsel %vm123, %v547, 0
    %556 = vmatpush.xpose.msra.mxu0 0.0
    %557 = vmatpush.xpose.msra.mxu0 0.0
    %558 = vmatpush.xpose.msra.mxu0 0.0
    %559 = vmatpush.xpose.msra.mxu0 0.0
    %560 = vmatpush.xpose.msra.mxu0 0.0
    %561 = vmatpush.xpose.msra.mxu0 0.0
    %562 = vmatpush.xpose.msra.mxu0 0.0
    %563 = vmatpush.xpose.msra.mxu0 0.0
    %564 = vmatpush.xpose.msra.mxu0 0.0
    %565 = vmatpush.xpose.msra.mxu0 0.0
    %566 = vmatpush.xpose.msra.mxu0 0.0
    %567 = vmatpush.xpose.msra.mxu0 0.0
    %568 = vmatpush.xpose.msra.mxu0 0.0
    %569 = vmatpush.xpose.msra.mxu0 0.0
    %570 = vmatpush.xpose.msra.mxu0 0.0
    %571 = vmatpush.xpose.msra.mxu0 %v554
    %572 = vmatmul.f32.gmra.mxu0 %v552
    %v573 = vpop.f32.mrf.mxu0
    %v574 = vadd.f32 %v550, %v573
    %575 = vdwg.mxu0
    %576 = vrot.lane.b32.xlu0 %v101, 96
    %v577 = vpop.permute.xlu0 %576
    %579 = vrot.lane.b32.xlu0 %v423, 120
    %v580 = vpop.permute.xlu0 %579
    %v582 = vsel %vm123, %v87, 0
    %v584 = vsel %vm123, %v577, 0
    %586 = vmatpush.xpose.msra.mxu0 0.0
    %587 = vmatpush.xpose.msra.mxu0 0.0
    %588 = vmatpush.xpose.msra.mxu0 0.0
    %589 = vmatpush.xpose.msra.mxu0 0.0
    %590 = vmatpush.xpose.msra.mxu0 0.0
    %591 = vmatpush.xpose.msra.mxu0 0.0
    %592 = vmatpush.xpose.msra.mxu0 0.0
    %593 = vmatpush.xpose.msra.mxu0 0.0
    %594 = vmatpush.xpose.msra.mxu0 0.0
    %595 = vmatpush.xpose.msra.mxu0 0.0
    %596 = vmatpush.xpose.msra.mxu0 0.0
    %597 = vmatpush.xpose.msra.mxu0 0.0
    %598 = vmatpush.xpose.msra.mxu0 0.0
    %599 = vmatpush.xpose.msra.mxu0 0.0
    %600 = vmatpush.xpose.msra.mxu0 0.0
    %601 = vmatpush.xpose.msra.mxu0 %v584
    %602 = vmatmul.f32.gmra.mxu0 %v582
    %v603 = vpop.f32.mrf.mxu0
    %v604 = vadd.f32 %v580, %v603
    %605 = vdwg.mxu0
    %606 = vrot.lane.b32.xlu0 %v103, 96
    %v607 = vpop.permute.xlu0 %606
    %609 = vrot.lane.b32.xlu0 %v424, 120
    %v610 = vpop.permute.xlu0 %609
    %v612 = vsel %vm123, %v89, 0
    %v614 = vsel %vm123, %v607, 0
    %616 = vmatpush.xpose.msra.mxu0 0.0
    %617 = vmatpush.xpose.msra.mxu0 0.0
    %618 = vmatpush.xpose.msra.mxu0 0.0
    %619 = vmatpush.xpose.msra.mxu0 0.0
    %620 = vmatpush.xpose.msra.mxu0 0.0
    %621 = vmatpush.xpose.msra.mxu0 0.0
    %622 = vmatpush.xpose.msra.mxu0 0.0
    %623 = vmatpush.xpose.msra.mxu0 0.0
    %624 = vmatpush.xpose.msra.mxu0 0.0
    %625 = vmatpush.xpose.msra.mxu0 0.0
    %626 = vmatpush.xpose.msra.mxu0 0.0
    %627 = vmatpush.xpose.msra.mxu0 0.0
    %628 = vmatpush.xpose.msra.mxu0 0.0
    %629 = vmatpush.xpose.msra.mxu0 0.0
    %630 = vmatpush.xpose.msra.mxu0 0.0
    %631 = vmatpush.xpose.msra.mxu0 %v614
    %632 = vmatmul.f32.gmra.mxu0 %v612
    %v633 = vpop.f32.mrf.mxu0
    %v634 = vadd.f32 %v610, %v633
    %635 = vdwg.mxu0
    %636 = vrot.lane.b32.xlu0 %v105, 96
    %v637 = vpop.permute.xlu0 %636
    %639 = vrot.lane.b32.xlu0 %v425, 120
    %v640 = vpop.permute.xlu0 %639
    %v642 = vsel %vm123, %v91, 0
    %v644 = vsel %vm123, %v637, 0
    %646 = vmatpush.xpose.msra.mxu0 0.0
    %647 = vmatpush.xpose.msra.mxu0 0.0
    %648 = vmatpush.xpose.msra.mxu0 0.0
    %649 = vmatpush.xpose.msra.mxu0 0.0
    %650 = vmatpush.xpose.msra.mxu0 0.0
    %651 = vmatpush.xpose.msra.mxu0 0.0
    %652 = vmatpush.xpose.msra.mxu0 0.0
    %653 = vmatpush.xpose.msra.mxu0 0.0
    %654 = vmatpush.xpose.msra.mxu0 0.0
    %655 = vmatpush.xpose.msra.mxu0 0.0
    %656 = vmatpush.xpose.msra.mxu0 0.0
    %657 = vmatpush.xpose.msra.mxu0 0.0
    %658 = vmatpush.xpose.msra.mxu0 0.0
    %659 = vmatpush.xpose.msra.mxu0 0.0
    %660 = vmatpush.xpose.msra.mxu0 0.0
    %661 = vmatpush.xpose.msra.mxu0 %v644
    %662 = vmatmul.f32.gmra.mxu0 %v642
    %v663 = vpop.f32.mrf.mxu0
    %v664 = vadd.f32 %v640, %v663
    %665 = vdwg.mxu0
    %v666 = vld [vmem:[%s1] sm:$0x3]
    %v667 = vrot.slane %v666, 7
    %v668 = vrot.slane %v666, 6
    %v669 = vrot.slane %v666, 5
    %v670 = vrot.slane %v666, 4
    %v671 = vrot.slane %v666, 3
    %v672 = vrot.slane %v666, 2
    %v673 = vsel %vm363, %v666, %v667
    %v674 = vsel %vm372, %v673, %v668
    %v675 = vsel %vm381, %v674, %v669
    %v676 = vsel %vm390, %v675, %v669
    %v677 = vsel %vm399, %v676, %v670
    %v678 = vsel %vm408, %v677, %v671
    %v679 = vsel %vm417, %v678, %v672
    %v680 = vrot.slane %v679, 1
    %v681 = vrot.slane %v679, 2
    %v682 = vrot.slane %v679, 3
    %v683 = vrot.slane %v679, 4
    %v684 = vrot.slane %v679, 5
    %v685 = vrot.slane %v679, 6
    %v686 = vrot.slane %v679, 7
    %vm687 = vcmp.eq.s32.totalorder %v679, 0
    %vm688 = vcmp.eq.s32.totalorder %v680, 0
    %vm689 = vcmp.eq.s32.totalorder %v681, 0
    %vm690 = vcmp.eq.s32.totalorder %v682, 0
    %vm691 = vcmp.eq.s32.totalorder %v683, 0
    %vm692 = vcmp.eq.s32.totalorder %v684, 0
    %vm693 = vcmp.eq.s32.totalorder %v685, 0
    %vm694 = vcmp.eq.s32.totalorder %v686, 0
    %v695 = vsel %vm687, 1, 0
    %v696 = vsel %vm688, 1, 0
    %v697 = vsel %vm689, 1, 0
    %v698 = vsel %vm690, 1, 0
    %v699 = vsel %vm691, 1, 0
    %v700 = vsel %vm692, 1, 0
    %v701 = vsel %vm693, 1, 0
    %v702 = vsel %vm694, 1, 0
    %v703 = vperm.slane %v695, 0
    %v704 = vperm.slane %v696, 0
    %v705 = vperm.slane %v697, 0
    %v706 = vperm.slane %v698, 0
    %v707 = vperm.slane %v699, 0
    %v708 = vperm.slane %v700, 0
    %v709 = vperm.slane %v701, 0
    %v710 = vperm.slane %v702, 0
    %vm711 = vcmp.eq.s32.totalorder %v703, 1
    %vm712 = vcmp.eq.s32.totalorder %v704, 1
    %vm713 = vcmp.eq.s32.totalorder %v705, 1
    %vm714 = vcmp.eq.s32.totalorder %v706, 1
    %vm715 = vcmp.eq.s32.totalorder %v707, 1
    %vm716 = vcmp.eq.s32.totalorder %v708, 1
    %vm717 = vcmp.eq.s32.totalorder %v709, 1
    %vm718 = vcmp.eq.s32.totalorder %v710, 1
    %v719 = vsel %vm711, 1e-09, %v454
    %v720 = vsel %vm712, 1e-09, %v484
    %v721 = vsel %vm713, 1e-09, %v514
    %v722 = vsel %vm714, 1e-09, %v544
    %v723 = vsel %vm715, 1e-09, %v574
    %v724 = vsel %vm716, 1e-09, %v604
    %v725 = vsel %vm717, 1e-09, %v634
    %v726 = vsel %vm718, 1e-09, %v664
    %v727 = vsel %vm123, %v719, -inf
    %728 = vmax.xlane.f32.xlu0 %v727
    %v729 = vpop.xlane.xlu0 %728
    %v730 = vsel %vm123, %v720, -inf
    %731 = vmax.xlane.f32.xlu0 %v730
    %v732 = vpop.xlane.xlu0 %731
    %v733 = vsel %vm123, %v721, -inf
    %734 = vmax.xlane.f32.xlu0 %v733
    %v735 = vpop.xlane.xlu0 %734
    %v736 = vsel %vm123, %v722, -inf
    %737 = vmax.xlane.f32.xlu0 %v736
    %v738 = vpop.xlane.xlu0 %737
    %v739 = vsel %vm123, %v723, -inf
    %740 = vmax.xlane.f32.xlu0 %v739
    %v741 = vpop.xlane.xlu0 %740
    %v742 = vsel %vm123, %v724, -inf
    %743 = vmax.xlane.f32.xlu0 %v742
    %v744 = vpop.xlane.xlu0 %743
    %v745 = vsel %vm123, %v725, -inf
    %746 = vmax.xlane.f32.xlu0 %v745
    %v747 = vpop.xlane.xlu0 %746
    %v748 = vsel %vm123, %v726, -inf
    %749 = vmax.xlane.f32.xlu0 %v748
    %v750 = vpop.xlane.xlu0 %749
    %v751 = vsub.f32 %v719, %v729
    %v752 = vsub.f32 %v720, %v732
    %v753 = vsub.f32 %v721, %v735
    %v754 = vsub.f32 %v722, %v738
    %v755 = vsub.f32 %v723, %v741
    %v756 = vsub.f32 %v724, %v744
    %v757 = vsub.f32 %v725, %v747
    %v758 = vsub.f32 %v726, %v750
    %v759 = vmul.f32 %v751, 1.442695
    %v760 = vpow.pop %v759
    %v761 = vmul.f32 %v752, 1.442695
    %v762 = vpow.pop %v761
    %v763 = vmul.f32 %v753, 1.442695
    %v764 = vpow.pop %v763
    %v765 = vmul.f32 %v754, 1.442695
    %v766 = vpow.pop %v765
    %v767 = vmul.f32 %v755, 1.442695
    %v768 = vpow.pop %v767
    %v769 = vmul.f32 %v756, 1.442695
    %v770 = vpow.pop %v769
    %v771 = vmul.f32 %v757, 1.442695
    %v772 = vpow.pop %v771
    %v773 = vmul.f32 %v758, 1.442695
    %v774 = vpow.pop %v773
    %v775 = vsel %vm123, %v760, 0.0
    %776 = vadd.xlane.f32.xlu0 %v775
    %v777 = vpop.xlane.xlu0 %776
    %v778 = vsel %vm123, %v762, 0.0
    %779 = vadd.xlane.f32.xlu0 %v778
    %v780 = vpop.xlane.xlu0 %779
    %v781 = vsel %vm123, %v764, 0.0
    %782 = vadd.xlane.f32.xlu0 %v781
    %v783 = vpop.xlane.xlu0 %782
    %v784 = vsel %vm123, %v766, 0.0
    %785 = vadd.xlane.f32.xlu0 %v784
    %v786 = vpop.xlane.xlu0 %785
    %v787 = vsel %vm123, %v768, 0.0
    %788 = vadd.xlane.f32.xlu0 %v787
    %v789 = vpop.xlane.xlu0 %788
    %v790 = vsel %vm123, %v770, 0.0
    %791 = vadd.xlane.f32.xlu0 %v790
    %v792 = vpop.xlane.xlu0 %791
    %v793 = vsel %vm123, %v772, 0.0
    %794 = vadd.xlane.f32.xlu0 %v793
    %v795 = vpop.xlane.xlu0 %794
    %v796 = vsel %vm123, %v774, 0.0
    %797 = vadd.xlane.f32.xlu0 %v796
    %v798 = vpop.xlane.xlu0 %797
    %v799 = vrcp.pop %v777
    %v800 = vrcp.pop %v780
    %v801 = vrcp.pop %v783
    %v802 = vrcp.pop %v786
    %v803 = vrcp.pop %v789
    %v804 = vrcp.pop %v792
    %v805 = vrcp.pop %v795
    %v806 = vrcp.pop %v798
    %v807 = vmul.f32 %v760, %v799
    %v808 = vmul.f32 %v762, %v800
    %v809 = vmul.f32 %v764, %v801
    %v810 = vmul.f32 %v766, %v802
    %v811 = vmul.f32 %v768, %v803
    %v812 = vmul.f32 %v770, %v804
    %v813 = vmul.f32 %v772, %v805
    %v814 = vmul.f32 %v774, %v806
    %815 = vrot.lane.b32.xlu0 %v58, 64
    %v816 = vpop.permute.xlu0 %815
    %v819 = vsel %vm123, %v807, 0
    %821 = vmatpush.msra.mxu0 0.0
    %822 = vmatpush.msra.mxu0 0.0
    %823 = vmatpush.msra.mxu0 0.0
    %824 = vmatpush.msra.mxu0 0.0
    %825 = vmatpush.msra.mxu0 0.0
    %826 = vmatpush.msra.mxu0 0.0
    %827 = vmatpush.msra.mxu0 0.0
    %828 = vmatpush.msra.mxu0 0.0
    %829 = vmatpush.msra.mxu0 0.0
    %830 = vmatpush.msra.mxu0 0.0
    %831 = vmatpush.msra.mxu0 0.0
    %832 = vmatpush.msra.mxu0 0.0
    %833 = vmatpush.msra.mxu0 0.0
    %834 = vmatpush.msra.mxu0 0.0
    %835 = vmatpush.msra.mxu0 0.0
    %836 = vmatpush.msra.mxu0 %v816
    %837 = vmatmul.f32.gmra.mxu0 %v819
    %v838 = vpop.f32.mrf.mxu0
    %v839 = vadd.f32 0.0, %v838
    %840 = vdwg.mxu0
    %841 = vrot.lane.b32.xlu0 %v94, 64
    %v842 = vpop.permute.xlu0 %841
    %v845 = vsel %vm123, %v808, 0
    %847 = vmatpush.msra.mxu0 0.0
    %848 = vmatpush.msra.mxu0 0.0
    %849 = vmatpush.msra.mxu0 0.0
    %850 = vmatpush.msra.mxu0 0.0
    %851 = vmatpush.msra.mxu0 0.0
    %852 = vmatpush.msra.mxu0 0.0
    %853 = vmatpush.msra.mxu0 0.0
    %854 = vmatpush.msra.mxu0 0.0
    %855 = vmatpush.msra.mxu0 0.0
    %856 = vmatpush.msra.mxu0 0.0
    %857 = vmatpush.msra.mxu0 0.0
    %858 = vmatpush.msra.mxu0 0.0
    %859 = vmatpush.msra.mxu0 0.0
    %860 = vmatpush.msra.mxu0 0.0
    %861 = vmatpush.msra.mxu0 0.0
    %862 = vmatpush.msra.mxu0 %v842
    %863 = vmatmul.f32.gmra.mxu0 %v845
    %v864 = vpop.f32.mrf.mxu0
    %v865 = vadd.f32 0.0, %v864
    %866 = vdwg.mxu0
    %867 = vrot.lane.b32.xlu0 %v96, 64
    %v868 = vpop.permute.xlu0 %867
    %v871 = vsel %vm123, %v809, 0
    %873 = vmatpush.msra.mxu0 0.0
    %874 = vmatpush.msra.mxu0 0.0
    %875 = vmatpush.msra.mxu0 0.0
    %876 = vmatpush.msra.mxu0 0.0
    %877 = vmatpush.msra.mxu0 0.0
    %878 = vmatpush.msra.mxu0 0.0
    %879 = vmatpush.msra.mxu0 0.0
    %880 = vmatpush.msra.mxu0 0.0
    %881 = vmatpush.msra.mxu0 0.0
    %882 = vmatpush.msra.mxu0 0.0
    %883 = vmatpush.msra.mxu0 0.0
    %884 = vmatpush.msra.mxu0 0.0
    %885 = vmatpush.msra.mxu0 0.0
    %886 = vmatpush.msra.mxu0 0.0
    %887 = vmatpush.msra.mxu0 0.0
    %888 = vmatpush.msra.mxu0 %v868
    %889 = vmatmul.f32.gmra.mxu0 %v871
    %v890 = vpop.f32.mrf.mxu0
    %v891 = vadd.f32 0.0, %v890
    %892 = vdwg.mxu0
    %893 = vrot.lane.b32.xlu0 %v98, 64
    %v894 = vpop.permute.xlu0 %893
    %v897 = vsel %vm123, %v810, 0
    %899 = vmatpush.msra.mxu0 0.0
    %900 = vmatpush.msra.mxu0 0.0
    %901 = vmatpush.msra.mxu0 0.0
    %902 = vmatpush.msra.mxu0 0.0
    %903 = vmatpush.msra.mxu0 0.0
    %904 = vmatpush.msra.mxu0 0.0
    %905 = vmatpush.msra.mxu0 0.0
    %906 = vmatpush.msra.mxu0 0.0
    %907 = vmatpush.msra.mxu0 0.0
    %908 = vmatpush.msra.mxu0 0.0
    %909 = vmatpush.msra.mxu0 0.0
    %910 = vmatpush.msra.mxu0 0.0
    %911 = vmatpush.msra.mxu0 0.0
    %912 = vmatpush.msra.mxu0 0.0
    %913 = vmatpush.msra.mxu0 0.0
    %914 = vmatpush.msra.mxu0 %v894
    %915 = vmatmul.f32.gmra.mxu0 %v897
    %v916 = vpop.f32.mrf.mxu0
    %v917 = vadd.f32 0.0, %v916
    %918 = vdwg.mxu0
    %919 = vrot.lane.b32.xlu0 %v61, 64
    %v920 = vpop.permute.xlu0 %919
    %v923 = vsel %vm123, %v811, 0
    %925 = vmatpush.msra.mxu0 0.0
    %926 = vmatpush.msra.mxu0 0.0
    %927 = vmatpush.msra.mxu0 0.0
    %928 = vmatpush.msra.mxu0 0.0
    %929 = vmatpush.msra.mxu0 0.0
    %930 = vmatpush.msra.mxu0 0.0
    %931 = vmatpush.msra.mxu0 0.0
    %932 = vmatpush.msra.mxu0 0.0
    %933 = vmatpush.msra.mxu0 0.0
    %934 = vmatpush.msra.mxu0 0.0
    %935 = vmatpush.msra.mxu0 0.0
    %936 = vmatpush.msra.mxu0 0.0
    %937 = vmatpush.msra.mxu0 0.0
    %938 = vmatpush.msra.mxu0 0.0
    %939 = vmatpush.msra.mxu0 0.0
    %940 = vmatpush.msra.mxu0 %v920
    %941 = vmatmul.f32.gmra.mxu0 %v923
    %v942 = vpop.f32.mrf.mxu0
    %v943 = vadd.f32 0.0, %v942
    %944 = vdwg.mxu0
    %945 = vrot.lane.b32.xlu0 %v101, 64
    %v946 = vpop.permute.xlu0 %945
    %v949 = vsel %vm123, %v812, 0
    %951 = vmatpush.msra.mxu0 0.0
    %952 = vmatpush.msra.mxu0 0.0
    %953 = vmatpush.msra.mxu0 0.0
    %954 = vmatpush.msra.mxu0 0.0
    %955 = vmatpush.msra.mxu0 0.0
    %956 = vmatpush.msra.mxu0 0.0
    %957 = vmatpush.msra.mxu0 0.0
    %958 = vmatpush.msra.mxu0 0.0
    %959 = vmatpush.msra.mxu0 0.0
    %960 = vmatpush.msra.mxu0 0.0
    %961 = vmatpush.msra.mxu0 0.0
    %962 = vmatpush.msra.mxu0 0.0
    %963 = vmatpush.msra.mxu0 0.0
    %964 = vmatpush.msra.mxu0 0.0
    %965 = vmatpush.msra.mxu0 0.0
    %966 = vmatpush.msra.mxu0 %v946
    %967 = vmatmul.f32.gmra.mxu0 %v949
    %v968 = vpop.f32.mrf.mxu0
    %v969 = vadd.f32 0.0, %v968
    %970 = vdwg.mxu0
    %971 = vrot.lane.b32.xlu0 %v103, 64
    %v972 = vpop.permute.xlu0 %971
    %v975 = vsel %vm123, %v813, 0
    %977 = vmatpush.msra.mxu0 0.0
    %978 = vmatpush.msra.mxu0 0.0
    %979 = vmatpush.msra.mxu0 0.0
    %980 = vmatpush.msra.mxu0 0.0
    %981 = vmatpush.msra.mxu0 0.0
    %982 = vmatpush.msra.mxu0 0.0
    %983 = vmatpush.msra.mxu0 0.0
    %984 = vmatpush.msra.mxu0 0.0
    %985 = vmatpush.msra.mxu0 0.0
    %986 = vmatpush.msra.mxu0 0.0
    %987 = vmatpush.msra.mxu0 0.0
    %988 = vmatpush.msra.mxu0 0.0
    %989 = vmatpush.msra.mxu0 0.0
    %990 = vmatpush.msra.mxu0 0.0
    %991 = vmatpush.msra.mxu0 0.0
    %992 = vmatpush.msra.mxu0 %v972
    %993 = vmatmul.f32.gmra.mxu0 %v975
    %v994 = vpop.f32.mrf.mxu0
    %v995 = vadd.f32 0.0, %v994
    %996 = vdwg.mxu0
    %997 = vrot.lane.b32.xlu0 %v105, 64
    %v998 = vpop.permute.xlu0 %997
    %v1001 = vsel %vm123, %v814, 0
    %1003 = vmatpush.msra.mxu0 0.0
    %1004 = vmatpush.msra.mxu0 0.0
    %1005 = vmatpush.msra.mxu0 0.0
    %1006 = vmatpush.msra.mxu0 0.0
    %1007 = vmatpush.msra.mxu0 0.0
    %1008 = vmatpush.msra.mxu0 0.0
    %1009 = vmatpush.msra.mxu0 0.0
    %1010 = vmatpush.msra.mxu0 0.0
    %1011 = vmatpush.msra.mxu0 0.0
    %1012 = vmatpush.msra.mxu0 0.0
    %1013 = vmatpush.msra.mxu0 0.0
    %1014 = vmatpush.msra.mxu0 0.0
    %1015 = vmatpush.msra.mxu0 0.0
    %1016 = vmatpush.msra.mxu0 0.0
    %1017 = vmatpush.msra.mxu0 0.0
    %1018 = vmatpush.msra.mxu0 %v998
    %1019 = vmatmul.f32.gmra.mxu0 %v1001
    %v1020 = vpop.f32.mrf.mxu0
    %v1021 = vadd.f32 0.0, %v1020
    %1022 = vdwg.mxu0
    %1024 = vrot.lane.b32.xlu0 %v865, 8
    %v1025 = vpop.permute.xlu0 %1024
    %1028 = vrot.lane.b32.xlu0 %v891, 16
    %v1029 = vpop.permute.xlu0 %1028
    %1032 = vrot.lane.b32.xlu0 %v917, 24
    %v1033 = vpop.permute.xlu0 %1032
    %v1035 = vsel %vm123, %v839, %v1025
    %vm1036 = vcmask 130048
    %v1037 = vsel %vm1036, %v1035, %v1029
    %vm1038 = vcmask 195584
    %v1039 = vsel %vm1038, %v1037, %v1033
    %1041 = vrot.lane.b32.xlu0 %v969, 8
    %v1042 = vpop.permute.xlu0 %1041
    %1045 = vrot.lane.b32.xlu0 %v995, 16
    %v1046 = vpop.permute.xlu0 %1045
    %1049 = vrot.lane.b32.xlu0 %v1021, 24
    %v1050 = vpop.permute.xlu0 %1049
    %v1052 = vsel %vm123, %v943, %v1042
    %v1053 = vsel %vm1036, %v1052, %v1046
    %v1054 = vsel %vm1038, %v1053, %v1050
    %v1055 = vadd.f32 %v27, %v1039
    %v1056 = vadd.f32 %v28, %v1054
    %v1057 = vsel %vm33, %v1055, 0.0
    %1058 = vadd.xlane.f32.xlu0 %v1057
    %v1059 = vpop.xlane.xlu0 %1058
    %v1060 = vsel %vm33, %v1056, 0.0
    %1061 = vadd.xlane.f32.xlu0 %v1060
    %v1062 = vpop.xlane.xlu0 %1061
    %v1063 = vrcp.pop 32.0
    %v1064 = vmul.f32 32.0, %v1063
    %v1065 = vsub.f32 1.0, %v1064
    %v1066 = vmul.f32 %v1063, %v1065
    %v1067 = vadd.f32 %v1063, %v1066
    %vm1068 = vweird.f32 %v1063
    %v1069 = vsel %vm1068, %v1063, %v1067
    %v1070 = vmul.f32 %v1059, %v1069
    %v1071 = vmul.f32 %v1062, %v1069
    %v1072 = vsub.f32 %v1055, %v1070
    %v1073 = vsub.f32 %v1056, %v1071
    %v1074 = vmul.f32 %v1072, %v1072
    %v1075 = vmul.f32 %v1073, %v1073
    %v1076 = vsel %vm33, %v1074, 0.0
    %1077 = vadd.xlane.f32.xlu0 %v1076
    %v1078 = vpop.xlane.xlu0 %1077
    %v1079 = vsel %vm33, %v1075, 0.0
    %1080 = vadd.xlane.f32.xlu0 %v1079
    %v1081 = vpop.xlane.xlu0 %1080
    %v1082 = vmul.f32 %v1078, %v1069
    %v1083 = vmul.f32 %v1081, %v1069
    %v1084 = vadd.f32 %v1082, 1e-05
    %v1085 = vadd.f32 %v1083, 1e-05
    %v1086 = vrsqrt.pop %v1084
    %v1087 = vmul.f32 %v1086, %v1084
    %v1088 = vmul.f32 %v1087, %v1086
    %v1089 = vmul.f32 0.5, %v1088
    %v1090 = vsub.f32 1.5, %v1089
    %v1091 = vmul.f32 %v1086, %v1090
    %vm1092 = vweird.f32 %v1084
    %vm1093 = vweird.f32 %v1086
    %vm1094 = vmor %vm1092, %vm1093
    %v1095 = vsel %vm1094, %v1086, %v1091
    %v1096 = vrsqrt.pop %v1085
    %v1097 = vmul.f32 %v1096, %v1085
    %v1098 = vmul.f32 %v1097, %v1096
    %v1099 = vmul.f32 0.5, %v1098
    %v1100 = vsub.f32 1.5, %v1099
    %v1101 = vmul.f32 %v1096, %v1100
    %vm1102 = vweird.f32 %v1085
    %vm1103 = vweird.f32 %v1096
    %vm1104 = vmor %vm1102, %vm1103
    %v1105 = vsel %vm1104, %v1096, %v1101
    %v1106 = vmul.f32 %v1072, %v1095
    %v1107 = vmul.f32 %v1073, %v1105
    %v1108 = vperm.slane %v67, 0
    %v1109 = vmul.f32 %v1106, %v1108
    %v1110 = vmul.f32 %v1107, %v1108
    %v1111 = vperm.slane %v68, 0
    %v1112 = vadd.f32 %v1109, %v1111
    %v1113 = vadd.f32 %v1110, %v1111
    %v1114 = vld [vmem:[%s5] sm:$0xff]
    %v1115 = vld [vmem:[%s5 + $0x8] sm:$0xff]
    %v1116 = vld [vmem:[%s5 + $0x10] sm:$0xff]
    %v1117 = vld [vmem:[%s5 + $0x18] sm:$0xff]
    %v1118 = vld [vmem:[%s5 + $0x20] sm:$0xff]
    %v1119 = vld [vmem:[%s5 + $0x28] sm:$0xff]
    %v1120 = vld [vmem:[%s5 + $0x30] sm:$0xff]
    %v1121 = vld [vmem:[%s5 + $0x38] sm:$0xff]
    %v1122 = vld [vmem:[%s5 + $0x40] sm:$0xff]
    %v1123 = vld [vmem:[%s5 + $0x48] sm:$0xff]
    %v1124 = vld [vmem:[%s5 + $0x50] sm:$0xff]
    %v1125 = vld [vmem:[%s5 + $0x58] sm:$0xff]
    %v1126 = vld [vmem:[%s5 + $0x60] sm:$0xff]
    %v1127 = vld [vmem:[%s5 + $0x68] sm:$0xff]
    %v1128 = vld [vmem:[%s5 + $0x70] sm:$0xff]
    %v1129 = vld [vmem:[%s5 + $0x78] sm:$0xff]
    %v1130 = vperm.slane %v65, 0
    %v1132 = vsel %vm33, %v1112, 0
    %v1135 = vsel %vm33, %v1113, 0
    %1137 = vmatpush.msra.mxu0 0.0
    %1138 = vmatpush.msra.mxu0 0.0
    %1139 = vmatpush.msra.mxu0 0.0
    %1140 = vmatpush.msra.mxu0 0.0
    %1141 = vmatpush.msra.mxu0 0.0
    %1142 = vmatpush.msra.mxu0 0.0
    %1143 = vmatpush.msra.mxu0 0.0
    %1144 = vmatpush.msra.mxu0 0.0
    %1145 = vmatpush.msra.mxu0 0.0
    %1146 = vmatpush.msra.mxu0 0.0
    %1147 = vmatpush.msra.mxu0 0.0
    %1148 = vmatpush.msra.mxu0 0.0
    %1149 = vmatpush.msra.mxu0 %v1117
    %1150 = vmatpush.msra.mxu0 %v1116
    %1151 = vmatpush.msra.mxu0 %v1115
    %1152 = vmatpush.msra.mxu0 %v1114
    %1153 = vmatmul.f32.gmra.mxu0 %v1132
    %v1154 = vpop.f32.mrf.mxu0
    %v1155 = vadd.f32 %v1130, %v1154
    %1156 = vmatmul.f32.gmra.mxu0 %v1135
    %v1157 = vpop.f32.mrf.mxu0
    %v1158 = vadd.f32 %v1130, %v1157
    %1159 = vdwg.mxu0
    %v1160 = vmax.f32 %v1155, 0.0
    %v1161 = vmax.f32 %v1158, 0.0
    %v1162 = vperm.slane %v66, 0
    %v1164 = vsel %vm33, %v1160, 0
    %v1167 = vsel %vm33, %v1161, 0
    %1169 = vmatpush.msra.mxu0 0.0
    %1170 = vmatpush.msra.mxu0 0.0
    %1171 = vmatpush.msra.mxu0 0.0
    %1172 = vmatpush.msra.mxu0 0.0
    %1173 = vmatpush.msra.mxu0 0.0
    %1174 = vmatpush.msra.mxu0 0.0
    %1175 = vmatpush.msra.mxu0 0.0
    %1176 = vmatpush.msra.mxu0 0.0
    %1177 = vmatpush.msra.mxu0 0.0
    %1178 = vmatpush.msra.mxu0 0.0
    %1179 = vmatpush.msra.mxu0 0.0
    %1180 = vmatpush.msra.mxu0 0.0
    %1181 = vmatpush.msra.mxu0 %v1121
    %1182 = vmatpush.msra.mxu0 %v1120
    %1183 = vmatpush.msra.mxu0 %v1119
    %1184 = vmatpush.msra.mxu0 %v1118
    %1185 = vmatmul.f32.gmra.mxu0 %v1164
    %v1186 = vpop.f32.mrf.mxu0
    %v1187 = vadd.f32 %v1162, %v1186
    %1188 = vmatmul.f32.gmra.mxu0 %v1167
    %v1189 = vpop.f32.mrf.mxu0
    %v1190 = vadd.f32 %v1162, %v1189
    %1191 = vdwg.mxu0
    %v1192 = vadd.f32 %v1112, %v1187
    %v1193 = vadd.f32 %v1113, %v1190
    %v1194 = vsel %vm33, %v1192, 0.0
    %1195 = vadd.xlane.f32.xlu0 %v1194
    %v1196 = vpop.xlane.xlu0 %1195
    %v1197 = vsel %vm33, %v1193, 0.0
    %1198 = vadd.xlane.f32.xlu0 %v1197
    %v1199 = vpop.xlane.xlu0 %1198
    %v1200 = vmul.f32 %v1196, %v1069
    %v1201 = vmul.f32 %v1199, %v1069
    %v1202 = vsub.f32 %v1192, %v1200
    %v1203 = vsub.f32 %v1193, %v1201
    %v1204 = vmul.f32 %v1202, %v1202
    %v1205 = vmul.f32 %v1203, %v1203
    %v1206 = vsel %vm33, %v1204, 0.0
    %1207 = vadd.xlane.f32.xlu0 %v1206
    %v1208 = vpop.xlane.xlu0 %1207
    %v1209 = vsel %vm33, %v1205, 0.0
    %1210 = vadd.xlane.f32.xlu0 %v1209
    %v1211 = vpop.xlane.xlu0 %1210
    %v1212 = vmul.f32 %v1208, %v1069
    %v1213 = vmul.f32 %v1211, %v1069
    %v1214 = vadd.f32 %v1212, 1e-05
    %v1215 = vadd.f32 %v1213, 1e-05
    %v1216 = vrsqrt.pop %v1214
    %v1217 = vmul.f32 %v1216, %v1214
    %v1218 = vmul.f32 %v1217, %v1216
    %v1219 = vmul.f32 0.5, %v1218
    %v1220 = vsub.f32 1.5, %v1219
    %v1221 = vmul.f32 %v1216, %v1220
    %vm1222 = vweird.f32 %v1214
    %vm1223 = vweird.f32 %v1216
    %vm1224 = vmor %vm1222, %vm1223
    %v1225 = vsel %vm1224, %v1216, %v1221
    %v1226 = vrsqrt.pop %v1215
    %v1227 = vmul.f32 %v1226, %v1215
    %v1228 = vmul.f32 %v1227, %v1226
    %v1229 = vmul.f32 0.5, %v1228
    %v1230 = vsub.f32 1.5, %v1229
    %v1231 = vmul.f32 %v1226, %v1230
    %vm1232 = vweird.f32 %v1215
    %vm1233 = vweird.f32 %v1226
    %vm1234 = vmor %vm1232, %vm1233
    %v1235 = vsel %vm1234, %v1226, %v1231
    %v1236 = vmul.f32 %v1202, %v1225
    %v1237 = vmul.f32 %v1203, %v1235
    %v1238 = vperm.slane %v69, 0
    %v1239 = vmul.f32 %v1236, %v1238
    %v1240 = vmul.f32 %v1237, %v1238
    %v1241 = vperm.slane %v70, 0
    %v1242 = vadd.f32 %v1239, %v1241
    %v1243 = vadd.f32 %v1240, %v1241
    %v1244 = vld [vmem:[%s2] sm:$0xff]
    %v1245 = vld [vmem:[%s2 + $0x8] sm:$0xff]
    %vm1246 = vcmp.eq.s32.totalorder %v1244, 0
    %vm1247 = vcmp.eq.s32.totalorder %v1245, 0
    %v1248 = vsel %vm1246, 1, 0
    %v1249 = vsel %vm1247, 1, 0
    %1250 = vset.pattern.permute.xlu0 0
    %1251 = vperm.xlu0 %1250, %v1248
    %v1252 = vpop.permute.xlu0 %1251
    %1253 = vset.pattern.permute.xlu0 0
    %1254 = vperm.xlu0 %1253, %v1249
    %v1255 = vpop.permute.xlu0 %1254
    %vm1256 = vcmp.eq.s32.totalorder %v1252, 1
    %vm1257 = vcmp.eq.s32.totalorder %v1255, 1
    %v1258 = vsel %vm1256, -inf, %v1242
    %v1259 = vsel %vm1257, -inf, %v1243
    %v1260 = vsel %vm33, %v1258, -inf
    %v1261 = vrot.slane %v1260, 4
    %v1262 = vmax.f32 %v1260, %v1261
    %v1263 = vrot.slane %v1262, 2
    %v1264 = vmax.f32 %v1262, %v1263
    %v1265 = vrot.slane %v1264, 1
    %v1266 = vmax.f32 %v1264, %v1265
    %v1267 = vsel %vm33, %v1259, -inf
    %v1268 = vrot.slane %v1267, 4
    %v1269 = vmax.f32 %v1267, %v1268
    %v1270 = vrot.slane %v1269, 2
    %v1271 = vmax.f32 %v1269, %v1270
    %v1272 = vrot.slane %v1271, 1
    %v1273 = vmax.f32 %v1271, %v1272
    %v1274 = vsel %vm363, %v1266, %v1273
    %v1275 = vperm.slane %v71, 0
    %v1277 = vsel %vm33, %v1274, 0
    %1279 = vmatpush.msra.mxu0 0.0
    %1280 = vmatpush.msra.mxu0 0.0
    %1281 = vmatpush.msra.mxu0 0.0
    %1282 = vmatpush.msra.mxu0 0.0
    %1283 = vmatpush.msra.mxu0 0.0
    %1284 = vmatpush.msra.mxu0 0.0
    %1285 = vmatpush.msra.mxu0 0.0
    %1286 = vmatpush.msra.mxu0 0.0
    %1287 = vmatpush.msra.mxu0 0.0
    %1288 = vmatpush.msra.mxu0 0.0
    %1289 = vmatpush.msra.mxu0 0.0
    %1290 = vmatpush.msra.mxu0 0.0
    %1291 = vmatpush.msra.mxu0 %v1125
    %1292 = vmatpush.msra.mxu0 %v1124
    %1293 = vmatpush.msra.mxu0 %v1123
    %1294 = vmatpush.msra.mxu0 %v1122
    %1295 = vmatmul.f32.gmra.mxu0 %v1277
    %v1296 = vpop.f32.mrf.mxu0
    %v1297 = vadd.f32 %v1275, %v1296
    %1298 = vdwg.mxu0
    %v1299 = vmul.f32 %v1297, 0.5
    %v1300 = vmul.f32 %v1297, 0.70710677
    %v1301 = vand.u32 2147483647, %v1300
    %v1302 = vmul.f32 %v1301, 0.3275911
    %v1303 = vadd.f32 %v1302, 1.0
    %v1304 = vrcp.pop %v1303
    %v1305 = vmul.f32 %v1303, %v1304
    %v1306 = vsub.f32 1.0, %v1305
    %v1307 = vmul.f32 %v1304, %v1306
    %v1308 = vadd.f32 %v1304, %v1307
    %vm1309 = vweird.f32 %v1303
    %vm1310 = vweird.f32 %v1304
    %vm1311 = vmor %vm1309, %vm1310
    %v1312 = vsel %vm1311, %v1304, %v1308
    %v1313 = vand.u32 2147483647, %v1303
    %vm1314 = vcmp.eq.f32.partialorder %v1313, 8.507059e+37
    %v1315 = vand.u32 %v1303, 2147483648
    %v1316 = vor.u32 1.1754944e-38, %v1315
    %v1317 = vsel %vm1314, %v1316, %v1312
    %v1318 = vmul.f32 1.0, %v1317
    %v1319 = vmul.f32 %v1318, 1.0614054
    %v1320 = vadd.f32 %v1319, -1.4531521
    %v1321 = vmul.f32 %v1320, %v1318
    %v1322 = vadd.f32 %v1321, 1.4214138
    %v1323 = vmul.f32 %v1322, %v1318
    %v1324 = vadd.f32 %v1323, -0.28449672
    %v1325 = vmul.f32 %v1324, %v1318
    %v1326 = vadd.f32 %v1325, 0.2548296
    %v1327 = vmul.f32 %v1326, %v1318
    %v1328 = vsub.f32 0.0, %v1301
    %v1329 = vmul.f32 %v1328, %v1301
    %v1330 = vmul.f32 %v1329, 1.442695
    %v1331 = vpow.pop %v1330
    %v1332 = vmul.f32 %v1327, %v1331
    %v1333 = vsub.f32 1.0, %v1332
    %vm1334 = vcmp.ge.f32.partialorder %v1300, 0.0
    %v1335 = vsub.f32 0.0, %v1333
    %v1336 = vsel %vm1334, %v1333, %v1335
    %v1337 = vadd.f32 %v1336, 1.0
    %v1338 = vmul.f32 %v1299, %v1337
    %v1339 = vperm.slane %v72, 0
    %v1341 = vsel %vm33, %v1338, 0
    %1343 = vmatpush.msra.mxu0 0.0
    %1344 = vmatpush.msra.mxu0 0.0
    %1345 = vmatpush.msra.mxu0 0.0
    %1346 = vmatpush.msra.mxu0 0.0
    %1347 = vmatpush.msra.mxu0 0.0
    %1348 = vmatpush.msra.mxu0 0.0
    %1349 = vmatpush.msra.mxu0 0.0
    %1350 = vmatpush.msra.mxu0 0.0
    %1351 = vmatpush.msra.mxu0 0.0
    %1352 = vmatpush.msra.mxu0 0.0
    %1353 = vmatpush.msra.mxu0 0.0
    %1354 = vmatpush.msra.mxu0 0.0
    %1355 = vmatpush.msra.mxu0 %v1129
    %1356 = vmatpush.msra.mxu0 %v1128
    %1357 = vmatpush.msra.mxu0 %v1127
    %1358 = vmatpush.msra.mxu0 %v1126
    %1359 = vmatmul.f32.gmra.mxu0 %v1341
    %v1360 = vpop.f32.mrf.mxu0
    %v1361 = vadd.f32 %v1339, %v1360
    %1362 = vdwg.mxu0
    %vm1363 = vcmask 254976
    %1364 = vst.msk [vmem:[#allocation2] sm:$0x3] %vm1363, %v1361
    // Predicated region
    $region30: #{encoder_forward.1} parent=1 // pred_check
      _
    $region31: #{encoder_forward.1} parent=1 // pred_check_branch
      %1366 = sbr.rel (0) target = $region33
    $region32: #{encoder_forward.1} parent=1 // pred_region
      %1368 = vsyncadd [#allocation3], 0
      %s1370 = sshll.u32 [#allocation2], 4
      %s1371 = int_to_ptr.vmem [resolvable:$true] %s1370
      %s1372 = sshll.u32 %s7, 4
      %s1373 = int_to_ptr.hbm [resolvable:$true] %s1372
      %1375 = dma.vmem_to_hbm [thread:$0]  %s1371, 32, %s1373, [#allocation3]
    $region33: #{encoder_forward.1} parent=1 // pred_fallthru
      _
    // Predicated region
    $region34: #{encoder_forward.1} parent=1 // pred_check
      _
    $region35: #{encoder_forward.1} parent=1 // pred_check_branch
      %1377 = sbr.rel (0) target = $region37
    $region36: #{encoder_forward.1} parent=1 // pred_region
      %1379 = dma.done [#allocation3], 32
    $region37: #{encoder_forward.1} parent=1 // pred_fallthru
      _
    %1380 = vsyncpa [#allocation3], 1

</llo_original>
